<compile_context>
chip_gen: v5e
topology: v5e:2x2
jax: 0.10.0
libtpu: 0.0.40
codegen_flags: <defaults>
</compile_context>

<pallas_src>
import functools

import jax
import jax.numpy as jnp
from jax.experimental import pallas as pl
from jax.experimental.pallas import tpu as pltpu


# --------------------------------- the kernel --------------------------------
def mm_kernel(pooled_ref, patches_ref, sa_ref,
              tfc_w_ref, w1_ref, ca1_ref, ca2_ref,
              nc1_w_ref, nc2_w_ref, nfc1_w_ref, nfc2_w_ref,
              cls1_w_ref, cls2_w_ref, bias_ref,
              out_ref, *, batch_tile, num_features):
    f32 = jnp.float32
    bf16 = jnp.bfloat16
    relu = lambda t: jnp.maximum(t, 0.0)
    TB = batch_tile
    F = num_features
    BF = TB * F
    C = 192

    # packed small vectors: one (8, 256) tile, sliced at static offsets
    bp = bias_ref[...]
    b123   = bp[0:1, 0:192]     # conv1/2/3 bias (concat)
    nc1_b  = bp[1:2, 0:128]     # num_conv block1 bias (BN folded)
    nc2_b  = bp[2:3, 0:128]     # num_conv block2 bias (BN folded)
    nfc1_b = bp[3:4, 0:256]
    nfc2_b = bp[4:5, 0:128]
    tfc_b  = bp[5:6, 0:128]
    cls1_b = bp[6:7, 0:256]
    cls2_b = bp[7:8, 0:128]     # lane-padded

    # ------------------------------ text branch ------------------------------
    # TODO(synk): full RoBERTa encoder not implemented; pooled_ref stands in
    # for roberta(...).pooler_output. Dropout(p=0.3) is identity in eval mode.
    text_out = jnp.dot(pooled_ref[...], tfc_w_ref[...],
                       preferred_element_type=f32) + tfc_b          # (TB, 128)

    # --------------------------- numerical branch ----------------------------
    # fused conv1(k=3)+conv2(k=5)+conv3(k=7) as ONE im2col matmul + ReLU
    cc = relu(jnp.dot(patches_ref[...], w1_ref[...],
                      preferred_element_type=f32) + b123)           # (BF, 192)
    cc3 = cc.reshape(TB, F, C)                                      # channels-last

    # ---- ChannelAttention: mean over length -> Linear -> ReLU -> Linear -> sigmoid
    y = jnp.mean(cc3, axis=1)                                       # (TB, C)
    h = relu(jnp.dot(y, ca1_ref[...], preferred_element_type=f32))  # (TB, C//16)
    s = jax.nn.sigmoid(jnp.dot(h, ca2_ref[...],
                               preferred_element_type=f32))         # (TB, C)
    cc3 = cc3 * s[:, None, :]

    # ---- SpatialAttention: [mean_c ; max_c] -> Conv1d(2,1,7) -> sigmoid
    # taps live in SMEM -> scalar * vector multiplies (no lane extracts)
    avg_c = jnp.mean(cc3, axis=2)                                   # (TB, F)
    max_c = jnp.max(cc3, axis=2)                                    # (TB, F)
    zpad3 = jnp.zeros((TB, 3), f32)
    avg_p = jnp.concatenate([zpad3, avg_c, zpad3], axis=-1)         # (TB, F+6)
    max_p = jnp.concatenate([zpad3, max_c, zpad3], axis=-1)
    att = jnp.zeros((TB, F), f32)
    for t in range(7):
        att = att + avg_p[:, t:t + F] * sa_ref[t] \
                  + max_p[:, t:t + F] * sa_ref[7 + t]
    cc3 = cc3 * jax.nn.sigmoid(att)[:, :, None]

    # per-row position-in-sample masks for the roll-based conv shifts
    f_pos = jax.lax.broadcasted_iota(jnp.int32, (BF, 128), 0) % F
    not_first = f_pos != 0                                          # f == 0 rows
    not_last = f_pos != (F - 1)                                     # f == F-1 rows

    # ---- num_conv: (Conv1d k=3 'same' + folded-BN + ReLU) x2, channels-last.
    # Matmuls run on UNshifted activations (bf16 operands, fp32 accumulate);
    # the 128-lane tap outputs are shifted with pltpu.roll along the flattened
    # B*F (sublane) axis and per-sample boundary rows are masked to zero.
    def conv3_cl(x_flat, w_ref, bias_row):
        # x_flat: (BF, Cin) f32; w_ref: (3, Cin, 128) bf16
        xb = x_flat.astype(bf16)
        y_prev = jnp.dot(xb, w_ref[0], preferred_element_type=f32)  # tap for x[f-1]
        y_cur = jnp.dot(xb, w_ref[1], preferred_element_type=f32)   # tap for x[f]
        y_next = jnp.dot(xb, w_ref[2], preferred_element_type=f32)  # tap for x[f+1]
        sp = pltpu.roll(y_prev, shift=1, axis=0)                    # sp[f] = y_prev[f-1]
        sn = pltpu.roll(y_next, shift=BF - 1, axis=0)               # sn[f] = y_next[f+1]
        return (y_cur
                + jnp.where(not_first, sp, 0.0)
                + jnp.where(not_last, sn, 0.0)
                + bias_row)                                         # (BF, 128)

    z = relu(conv3_cl(cc3.reshape(BF, C), nc1_w_ref, nc1_b))        # (BF, 128)
    z = relu(conv3_cl(z, nc2_w_ref, nc2_b))                         # (BF, 128)
    pooled_num = jnp.max(z.reshape(TB, F, 128), axis=1)             # (TB, 128) AdaptiveMaxPool1d(1)

    # ---- num_fc: Linear -> ReLU -> (Dropout=id) -> Linear -> ReLU
    h1 = relu(jnp.dot(pooled_num, nfc1_w_ref[...],
                      preferred_element_type=f32) + nfc1_b)         # (TB, 256)
    num_out = relu(jnp.dot(h1, nfc2_w_ref[...],
                           preferred_element_type=f32) + nfc2_b)    # (TB, 128)

    # ---------------------------- fusion + classifier ------------------------
    fused = jnp.concatenate([text_out, num_out], axis=-1)           # (TB, 256)
    hc = relu(jnp.dot(fused, cls1_w_ref[...],
                      preferred_element_type=f32) + cls1_b)         # (TB, 256)
    out_ref[...] = jnp.dot(hc, cls2_w_ref[...],
                           preferred_element_type=f32) + cls2_b     # (TB, 128) lane-padded logits


# ------------------------------ wrapper / params ------------------------------
def multimodal_classifier(pooled_output, numerical, params, *, batch_tile=None):
    f32 = jnp.float32
    B, HR = pooled_output.shape
    F = numerical.shape[1]
    NL = params["cls2_w"].shape[1]
    C, R = 192, 192 // 16
    NLP = 128                      # lane-padded logits width

    # ---- batch-tile choice: cap rows per grid step at ~2048 so one step fits
    # v7x's 64 MiB VMEM / v5e's 16 MiB scoped default, while keeping enough
    # rows per step that the grid loop isn't pure per-step overhead.
    if batch_tile is None:
        TB = min(B, max(8, (2048 // max(F, 1)) // 8 * 8))
    else:
        TB = min(batch_tile, B)
    if TB < B:
        TB = max(8, (TB // 8) * 8)          # blocked batch dim must be 8-aligned
    Bp = ((B + TB - 1) // TB) * TB          # pad batch to a multiple of TB
    grid = (Bp // TB,)

    pooled_p = jnp.pad(pooled_output.astype(f32), ((0, Bp - B), (0, 0)))
    num_p = jnp.pad(numerical.astype(f32), ((0, Bp - B), (0, 0)))

    # ---- host-side layout plumbing (one-time, outside the kernel) ----------
    # im2col patches for the fused conv1/2/3 (max kernel = 7, pad = 3)
    xpad = jnp.pad(num_p, ((0, 0), (3, 3)))                          # (Bp, F+6)
    idx = jnp.arange(F)[:, None] + jnp.arange(7)[None, :]            # (F, 7)
    patches = xpad[:, idx].reshape(Bp * F, 7)
    patches = jnp.pad(patches, ((0, 0), (0, 1)))                     # (Bp*F, 8)

    # fused first-conv weight: 8 taps x 192 out-channels (tap t <-> x[f+t-3])
    W1 = jnp.zeros((8, C), f32)
    W1 = W1.at[2:5, 0:64].set(params["c1_w"].T)        # k=3, pad=1 -> taps 2..4
    W1 = W1.at[1:6, 64:128].set(params["c2_w"].T)      # k=5, pad=2 -> taps 1..5
    W1 = W1.at[0:7, 128:192].set(params["c3_w"].T)     # k=7, pad=3 -> taps 0..6
    b123 = jnp.concatenate([params["c1_b"], params["c2_b"], params["c3_b"]])

    # fold eval-mode BatchNorm into the num_conv weights / biases
    def fold_bn(w, b, g, beta, m, v, eps=1e-5):
        scale = g * jax.lax.rsqrt(v + eps)                           # (O,)
        wm = jnp.transpose(w, (2, 1, 0)) * scale[None, None, :]      # (3, Cin, O)
        bm = (b - m) * scale + beta
        return wm, bm

    nc1_wm, nc1_bf = fold_bn(params["nc1_w"], params["nc1_b"], params["bn1_g"],
                             params["bn1_b"], params["bn1_m"], params["bn1_v"])
    nc2_wm, nc2_bf = fold_bn(params["nc2_w"], params["nc2_b"], params["bn2_g"],
                             params["bn2_b"], params["bn2_m"], params["bn2_v"])
    # bf16 operands for the FLOP-dominant num_conv matmuls (fp32 accumulation)
    nc1_wm = nc1_wm.astype(jnp.bfloat16)
    nc2_wm = nc2_wm.astype(jnp.bfloat16)

    # lane-pad the classifier head to 128 output lanes (sliced back below)
    cls2_wp = jnp.zeros((256, NLP), f32).at[:, :NL].set(params["cls2_w"])
    cls2_bp = jnp.zeros((NLP,), f32).at[:NL].set(params["cls2_b"])

    # pack all small bias vectors into one (8, 256) tile (1 DMA instead of 8)
    def row(v):
        return jnp.zeros((1, 256), f32).at[0, :v.shape[0]].set(v)

    bias_pack = jnp.concatenate([
        row(b123), row(nc1_bf), row(nc2_bf), row(params["nfc1_b"]),
        row(params["nfc2_b"]), row(params["tfc_b"]), row(params["cls1_b"]),
        row(cls2_bp),
    ], axis=0)

    # spatial-attention taps as SMEM scalars: [w_avg(7) ; w_max(7)]
    sa_flat = params["sa_w"].reshape(-1).astype(f32)                  # (14,)

    kern = functools.partial(mm_kernel, batch_tile=TB, num_features=F)

    def bcast(shp):
        return pl.BlockSpec(shp, lambda i, _n=len(shp): (0,) * _n)

    in_specs = [
        pl.BlockSpec((TB, HR), lambda i: (i, 0)),             # pooled_output
        pl.BlockSpec((TB * F, 8), lambda i: (i, 0)),          # im2col patches
        pl.BlockSpec(memory_space=pltpu.MemorySpace.SMEM),    # spatial-attn taps
        bcast((HR, 128)),                                     # text_fc W
        bcast((8, C)),                                        # fused conv1/2/3 W
        bcast((C, R)),                                        # channel-attn W1
        bcast((R, C)),                                        # channel-attn W2
        bcast((3, C, 128)),                                   # num_conv1 (BN folded, bf16)
        bcast((3, 128, 128)),                                 # num_conv2 (BN folded, bf16)
        bcast((128, 256)),                                    # num_fc1 W
        bcast((256, 128)),                                    # num_fc2 W
        bcast((256, 256)),                                    # classifier W1
        bcast((256, NLP)),                                    # classifier W2 (lane-padded)
        bcast((8, 256)),                                      # packed biases
    ]

    # advisory cost estimate so XLA can schedule neighbors around the call
    flops = int(
        Bp * F * 2 * (8 * C + 3 * C * 128 + 3 * 128 * 128)
        + Bp * 2 * (HR * 128 + 2 * C * R + 128 * 256 + 256 * 128
                    + 256 * 256 + 256 * NLP))
    transcendentals = int(Bp * (C + F))
    bytes_accessed = int(
        4 * (pooled_p.size + patches.size + bias_pack.size + sa_flat.size
             + params["tfc_w"].size + W1.size + params["ca1_w"].size
             + params["ca2_w"].size + params["nfc1_w"].size
             + params["nfc2_w"].size + params["cls1_w"].size + cls2_wp.size
             + Bp * NLP)
        + 2 * (nc1_wm.size + nc2_wm.size))

    out = pl.pallas_call(
        kern,
        out_shape=jax.ShapeDtypeStruct((Bp, NLP), f32),
        grid=grid,
        in_specs=in_specs,
        out_specs=pl.BlockSpec((TB, NLP), lambda i: (i, 0)),
        compiler_params=pltpu.CompilerParams(
            dimension_semantics=("parallel",),
            vmem_limit_bytes=48 * 1024 * 1024),
        cost_estimate=pl.CostEstimate(flops=flops,
                                      transcendentals=transcendentals,
                                      bytes_accessed=bytes_accessed),
    )(pooled_p, patches, sa_flat,
      params["tfc_w"], W1, params["ca1_w"], params["ca2_w"],
      nc1_wm, nc2_wm, params["nfc1_w"], params["nfc2_w"],
      params["cls1_w"], cls2_wp, bias_pack)

    return out[:B, :NL]


def init_params(key, roberta_hidden, num_labels):
    def rnd(k, shape, scale=0.08):
        return scale * jax.random.normal(k, shape, dtype=jnp.float32)

    keys = iter(jax.random.split(key, 48))
    C = 64 * 3
    R = C // 16
    p = {}
    # text_fc: Linear(roberta_hidden -> 128) stored as (in, out) for x @ W
    p["tfc_w"] = rnd(next(keys), (roberta_hidden, 128))
    p["tfc_b"] = rnd(next(keys), (128,))
    # conv1/2/3: Conv1d(1 -> 64, k=3/5/7)   weight (O, K), bias (O,)
    p["c1_w"] = rnd(next(keys), (64, 3)); p["c1_b"] = rnd(next(keys), (64,))
    p["c2_w"] = rnd(next(keys), (64, 5)); p["c2_b"] = rnd(next(keys), (64,))
    p["c3_w"] = rnd(next(keys), (64, 7)); p["c3_b"] = rnd(next(keys), (64,))
    # channel attention MLP (no bias, (in,out) form), spatial attention conv (2,7)
    p["ca1_w"] = rnd(next(keys), (C, R))
    p["ca2_w"] = rnd(next(keys), (R, C))
    p["sa_w"] = rnd(next(keys), (2, 7))
    # num_conv block 1: Conv1d(192->128,k=3) weight (O,Cin,K), BN(128) running stats
    p["nc1_w"] = rnd(next(keys), (128, C, 3)); p["nc1_b"] = rnd(next(keys), (128,))
    p["bn1_g"] = 1.0 + rnd(next(keys), (128,))
    p["bn1_b"] = rnd(next(keys), (128,))
    p["bn1_m"] = rnd(next(keys), (128,))
    p["bn1_v"] = 1.0 + jnp.abs(rnd(next(keys), (128,)))
    # num_conv block 2: Conv1d(128->128,k=3), BN(128)
    p["nc2_w"] = rnd(next(keys), (128, 128, 3)); p["nc2_b"] = rnd(next(keys), (128,))
    p["bn2_g"] = 1.0 + rnd(next(keys), (128,))
    p["bn2_b"] = rnd(next(keys), (128,))
    p["bn2_m"] = rnd(next(keys), (128,))
    p["bn2_v"] = 1.0 + jnp.abs(rnd(next(keys), (128,)))
    # num_fc: Linear(128->256), Linear(256->128) in (in,out) form
    p["nfc1_w"] = rnd(next(keys), (128, 256)); p["nfc1_b"] = rnd(next(keys), (256,))
    p["nfc2_w"] = rnd(next(keys), (256, 128)); p["nfc2_b"] = rnd(next(keys), (128,))
    # classifier: Linear(256->256), Linear(256->num_labels) in (in,out) form
    p["cls1_w"] = rnd(next(keys), (256, 256)); p["cls1_b"] = rnd(next(keys), (256,))
    p["cls2_w"] = rnd(next(keys), (256, num_labels))
    p["cls2_b"] = rnd(next(keys), (num_labels,))
    return p


# ---------------------- pure-JAX reference (PyTorch semantics) ----------------
def reference_forward(pooled, numerical, p):
    relu = lambda t: jnp.maximum(t, 0.0)
    B, F = numerical.shape

    text_out = pooled @ p["tfc_w"] + p["tfc_b"]

    def conv1d_in1(x, w, b):                       # x (B,F) -> (B,O,F)
        O, K = w.shape
        pad = (K - 1) // 2
        xp = jnp.pad(x, ((0, 0), (pad, pad)))
        out = jnp.zeros((B, O, F), jnp.float32)
        for k in range(K):
            out = out + w[None, :, k, None] * xp[:, None, k:k + F]
        return out + b[None, :, None]

    c1 = relu(conv1d_in1(numerical, p["c1_w"], p["c1_b"]))
    c2 = relu(conv1d_in1(numerical, p["c2_w"], p["c2_b"]))
    c3 = relu(conv1d_in1(numerical, p["c3_w"], p["c3_b"]))
    cc = jnp.concatenate([c1, c2, c3], axis=1)     # (B, 192, F)

    y = jnp.mean(cc, axis=-1)
    s = jax.nn.sigmoid(relu(y @ p["ca1_w"]) @ p["ca2_w"])
    cc = cc * s[:, :, None]

    avg_c = jnp.mean(cc, axis=1)
    max_c = jnp.max(cc, axis=1)
    ap = jnp.pad(avg_c, ((0, 0), (3, 3)))
    mp = jnp.pad(max_c, ((0, 0), (3, 3)))
    att = jnp.zeros((B, F), jnp.float32)
    for t in range(7):
        att = att + ap[:, t:t + F] * p["sa_w"][0, t] + mp[:, t:t + F] * p["sa_w"][1, t]
    cc = cc * jax.nn.sigmoid(att)[:, None, :]

    def conv1d_c(x, w, b):                          # x (B,C,F), w (O,C,K)
        O, Cin, K = w.shape
        pad = (K - 1) // 2
        xp = jnp.pad(x, ((0, 0), (0, 0), (pad, pad)))
        out = jnp.zeros((B, O, F), jnp.float32)
        for k in range(K):
            out = out + jnp.einsum("oc,bcf->bof", w[:, :, k], xp[:, :, k:k + F])
        return out + b[None, :, None]

    def bn(x, g, beta, m, v, eps=1e-5):
        return (x - m[None, :, None]) * (g[None, :, None] / jnp.sqrt(v[None, :, None] + eps)) \
            + beta[None, :, None]

    z = relu(bn(conv1d_c(cc, p["nc1_w"], p["nc1_b"]),
                p["bn1_g"], p["bn1_b"], p["bn1_m"], p["bn1_v"]))
    z = relu(bn(conv1d_c(z, p["nc2_w"], p["nc2_b"]),
                p["bn2_g"], p["bn2_b"], p["bn2_m"], p["bn2_v"]))
    pooled_num = jnp.max(z, axis=-1)
    h1 = relu(pooled_num @ p["nfc1_w"] + p["nfc1_b"])
    num_out = relu(h1 @ p["nfc2_w"] + p["nfc2_b"])
    fused = jnp.concatenate([text_out, num_out], axis=-1)
    hc = relu(fused @ p["cls1_w"] + p["cls1_b"])
    return hc @ p["cls2_w"] + p["cls2_b"]


if __name__ == "__main__":
    B = 2                    # batch
    NUM_FEATURES = 16        # numerical feature length
    ROBERTA_HIDDEN = 32      # stand-in hidden size for roberta pooler output
    NUM_LABELS = 4

    key = jax.random.PRNGKey(0)
    k_pooled, k_num, k_params = jax.random.split(key, 3)
    pooled_output = jax.random.normal(k_pooled, (B, ROBERTA_HIDDEN), dtype=jnp.float32)
    numerical = jax.random.normal(k_num, (B, NUM_FEATURES), dtype=jnp.float32)
    params = init_params(k_params, ROBERTA_HIDDEN, NUM_LABELS)

    logits = multimodal_classifier(pooled_output, numerical, params)
    jax.block_until_ready(logits)
    assert logits.shape == (B, NUM_LABELS)

    # correctness check against a pure-JAX reference of the PyTorch forward
    # (num_conv matmuls use bf16 operands + fp32 accumulation in the kernel)
    with jax.default_matmul_precision("highest"):
        ref = reference_forward(pooled_output, numerical, params)
    rel_err = float(jnp.max(jnp.abs(logits - ref)) / (jnp.max(jnp.abs(ref)) + 1e-6))
    assert rel_err < 1e-2, f"kernel mismatch vs reference, rel err = {rel_err}"

    print("KERNEL_OK")
</pallas_src>

<mosaic_0001>
module attributes {stable_mosaic.version = 11 : i64} {
  func.func @mm_kernel(%arg0: i32, %arg1: memref<2x32xf32, #tpu.memory_space<vmem>>, %arg2: memref<32x8xf32, #tpu.memory_space<vmem>>, %arg3: memref<14xf32, #tpu.memory_space<smem>>, %arg4: memref<32x128xf32, #tpu.memory_space<vmem>>, %arg5: memref<8x192xf32, #tpu.memory_space<vmem>>, %arg6: memref<192x12xf32, #tpu.memory_space<vmem>>, %arg7: memref<12x192xf32, #tpu.memory_space<vmem>>, %arg8: memref<3x192x128xbf16, #tpu.memory_space<vmem>>, %arg9: memref<3x128x128xbf16, #tpu.memory_space<vmem>>, %arg10: memref<128x256xf32, #tpu.memory_space<vmem>>, %arg11: memref<256x128xf32, #tpu.memory_space<vmem>>, %arg12: memref<256x256xf32, #tpu.memory_space<vmem>>, %arg13: memref<256x128xf32, #tpu.memory_space<vmem>>, %arg14: memref<8x256xf32, #tpu.memory_space<vmem>>, %arg15: memref<2x128xf32, #tpu.memory_space<vmem>>) attributes {dimension_semantics = [#tpu.dimension_semantics<parallel>], iteration_bounds = array<i64: 1>, scalar_prefetch = 0 : i64, scratch_operands = 0 : i64, tpu.core_type = #tpu.core_type<tc>, window_params = [{transform_indices = @transform_0, window_bounds = array<i64: 2, 32>}, {transform_indices = @transform_1, window_bounds = array<i64: 32, 8>}, {transform_indices = @transform_2, window_bounds = array<i64: 14>}, {pipeline_mode = #tpu.pipeline_mode<synchronous>, transform_indices = @transform_3, window_bounds = array<i64: 32, 128>}, {pipeline_mode = #tpu.pipeline_mode<synchronous>, transform_indices = @transform_4, window_bounds = array<i64: 8, 192>}, {pipeline_mode = #tpu.pipeline_mode<synchronous>, transform_indices = @transform_5, window_bounds = array<i64: 192, 12>}, {pipeline_mode = #tpu.pipeline_mode<synchronous>, transform_indices = @transform_6, window_bounds = array<i64: 12, 192>}, {pipeline_mode = #tpu.pipeline_mode<synchronous>, transform_indices = @transform_7, window_bounds = array<i64: 3, 192, 128>}, {pipeline_mode = #tpu.pipeline_mode<synchronous>, transform_indices = @transform_8, window_bounds = array<i64: 3, 128, 128>}, {pipeline_mode = #tpu.pipeline_mode<synchronous>, transform_indices = @transform_9, window_bounds = array<i64: 128, 256>}, {pipeline_mode = #tpu.pipeline_mode<synchronous>, transform_indices = @transform_10, window_bounds = array<i64: 256, 128>}, {pipeline_mode = #tpu.pipeline_mode<synchronous>, transform_indices = @transform_11, window_bounds = array<i64: 256, 256>}, {pipeline_mode = #tpu.pipeline_mode<synchronous>, transform_indices = @transform_12, window_bounds = array<i64: 256, 128>}, {pipeline_mode = #tpu.pipeline_mode<synchronous>, transform_indices = @transform_13, window_bounds = array<i64: 8, 256>}, {transform_indices = @transform_14, window_bounds = array<i64: 2, 128>}]} {
    %c0 = arith.constant 0 : index
    %c0_0 = arith.constant 0 : index
    %0 = vector.load %arg14[%c0, %c0_0] : memref<8x256xf32, #tpu.memory_space<vmem>>, vector<8x256xf32>
    %1 = vector.extract_strided_slice %0 {offsets = [0, 0], sizes = [1, 192], strides = [1, 1]} : vector<8x256xf32> to vector<1x192xf32>
    %2 = vector.extract_strided_slice %0 {offsets = [1, 0], sizes = [1, 128], strides = [1, 1]} : vector<8x256xf32> to vector<1x128xf32>
    %3 = vector.extract_strided_slice %0 {offsets = [2, 0], sizes = [1, 128], strides = [1, 1]} : vector<8x256xf32> to vector<1x128xf32>
    %4 = vector.extract_strided_slice %0 {offsets = [3, 0], sizes = [1, 256], strides = [1, 1]} : vector<8x256xf32> to vector<1x256xf32>
    %5 = vector.extract_strided_slice %0 {offsets = [4, 0], sizes = [1, 128], strides = [1, 1]} : vector<8x256xf32> to vector<1x128xf32>
    %6 = vector.extract_strided_slice %0 {offsets = [5, 0], sizes = [1, 128], strides = [1, 1]} : vector<8x256xf32> to vector<1x128xf32>
    %7 = vector.extract_strided_slice %0 {offsets = [6, 0], sizes = [1, 256], strides = [1, 1]} : vector<8x256xf32> to vector<1x256xf32>
    %8 = vector.extract_strided_slice %0 {offsets = [7, 0], sizes = [1, 128], strides = [1, 1]} : vector<8x256xf32> to vector<1x128xf32>
    %c0_1 = arith.constant 0 : index
    %c0_2 = arith.constant 0 : index
    %9 = vector.load %arg1[%c0_1, %c0_2] : memref<2x32xf32, #tpu.memory_space<vmem>>, vector<2x32xf32>
    %c0_3 = arith.constant 0 : index
    %c0_4 = arith.constant 0 : index
    %10 = vector.load %arg4[%c0_3, %c0_4] : memref<32x128xf32, #tpu.memory_space<vmem>>, vector<32x128xf32>
    %cst = arith.constant dense<0.000000e+00> : vector<2x128xf32>
    %11 = tpu.matmul %9, %10, %cst {dimension_numbers = #tpu.dot_dimension_numbers<[1], [0], [0], [1], [0, 0, 1, 1], [], []>} : vector<2x32xf32>, vector<32x128xf32>, vector<2x128xf32> -> vector<2x128xf32>
    %12 = vector.broadcast %6 : vector<1x128xf32> to vector<2x128xf32>
    %13 = arith.addf %11, %12 : vector<2x128xf32>
    %c0_5 = arith.constant 0 : index
    %c0_6 = arith.constant 0 : index
    %14 = vector.load %arg2[%c0_5, %c0_6] : memref<32x8xf32, #tpu.memory_space<vmem>>, vector<32x8xf32>
    %c0_7 = arith.constant 0 : index
    %c0_8 = arith.constant 0 : index
    %15 = vector.load %arg5[%c0_7, %c0_8] : memref<8x192xf32, #tpu.memory_space<vmem>>, vector<8x192xf32>
    %cst_9 = arith.constant dense<0.000000e+00> : vector<32x192xf32>
    %16 = tpu.matmul %14, %15, %cst_9 {dimension_numbers = #tpu.dot_dimension_numbers<[1], [0], [0], [1], [0, 0, 1, 1], [], []>} : vector<32x8xf32>, vector<8x192xf32>, vector<32x192xf32> -> vector<32x192xf32>
    %17 = vector.broadcast %1 : vector<1x192xf32> to vector<32x192xf32>
    %18 = arith.addf %16, %17 : vector<32x192xf32>
    %cst_10 = arith.constant 0.000000e+00 : f32
    %19 = vector.broadcast %cst_10 : f32 to vector<32x192xf32>
    %20 = arith.maximumf %18, %19 : vector<32x192xf32>
    %21 = vector.shape_cast %20 : vector<32x192xf32> to vector<2x16x192xf32>
    %cst_11 = arith.constant dense<0.000000e+00> : vector<2x192xf32>
    %22 = vector.multi_reduction <add>, %21, %cst_11 [1] : vector<2x16x192xf32> to vector<2x192xf32>
    %cst_12 = arith.constant 1.600000e+01 : f32
    %23 = vector.broadcast %cst_12 : f32 to vector<2x192xf32>
    %24 = arith.divf %22, %23 : vector<2x192xf32>
    %c0_13 = arith.constant 0 : index
    %c0_14 = arith.constant 0 : index
    %25 = vector.load %arg6[%c0_13, %c0_14] : memref<192x12xf32, #tpu.memory_space<vmem>>, vector<192x12xf32>
    %cst_15 = arith.constant dense<0.000000e+00> : vector<2x12xf32>
    %26 = tpu.matmul %24, %25, %cst_15 {dimension_numbers = #tpu.dot_dimension_numbers<[1], [0], [0], [1], [0, 0, 1, 1], [], []>} : vector<2x192xf32>, vector<192x12xf32>, vector<2x12xf32> -> vector<2x12xf32>
    %cst_16 = arith.constant 0.000000e+00 : f32
    %27 = vector.broadcast %cst_16 : f32 to vector<2x12xf32>
    %28 = arith.maximumf %26, %27 : vector<2x12xf32>
    %c0_17 = arith.constant 0 : index
    %c0_18 = arith.constant 0 : index
    %29 = vector.load %arg7[%c0_17, %c0_18] : memref<12x192xf32, #tpu.memory_space<vmem>>, vector<12x192xf32>
    %cst_19 = arith.constant dense<0.000000e+00> : vector<2x192xf32>
    %30 = tpu.matmul %28, %29, %cst_19 {dimension_numbers = #tpu.dot_dimension_numbers<[1], [0], [0], [1], [0, 0, 1, 1], [], []>} : vector<2x12xf32>, vector<12x192xf32>, vector<2x192xf32> -> vector<2x192xf32>
    %31 = arith.negf %30 : vector<2x192xf32>
    %32 = math.exp %31 : vector<2x192xf32>
    %cst_20 = arith.constant 1.000000e+00 : f32
    %33 = vector.broadcast %cst_20 : f32 to vector<2x192xf32>
    %34 = arith.addf %33, %32 : vector<2x192xf32>
    %35 = arith.divf %33, %34 : vector<2x192xf32>
    %36 = vector.shape_cast %35 : vector<2x192xf32> to vector<2x1x192xf32>
    %37 = vector.broadcast %36 : vector<2x1x192xf32> to vector<2x16x192xf32>
    %38 = arith.mulf %21, %37 : vector<2x16x192xf32>
    %cst_21 = arith.constant dense<0.000000e+00> : vector<2x16xf32>
    %39 = vector.multi_reduction <add>, %38, %cst_21 [2] : vector<2x16x192xf32> to vector<2x16xf32>
    %cst_22 = arith.constant 1.920000e+02 : f32
    %40 = vector.broadcast %cst_22 : f32 to vector<2x16xf32>
    %41 = arith.divf %39, %40 : vector<2x16xf32>
    %cst_23 = arith.constant dense<0xFF800000> : vector<2x16xf32>
    %42 = vector.multi_reduction <maximumf>, %38, %cst_23 [2] : vector<2x16x192xf32> to vector<2x16xf32>
    %cst_24 = arith.constant 0.000000e+00 : f32
    %43 = vector.broadcast %cst_24 : f32 to vector<2x3xf32>
    %44 = tpu.concatenate %43, %41, %43 in 1 : vector<2x3xf32>, vector<2x16xf32>, vector<2x3xf32> -> vector<2x22xf32>
    %45 = tpu.concatenate %43, %42, %43 in 1 : vector<2x3xf32>, vector<2x16xf32>, vector<2x3xf32> -> vector<2x22xf32>
    %cst_25 = arith.constant 0.000000e+00 : f32
    %46 = vector.broadcast %cst_25 : f32 to vector<2x16xf32>
    %47 = vector.extract_strided_slice %44 {offsets = [0, 0], sizes = [2, 16], strides = [1, 1]} : vector<2x22xf32> to vector<2x16xf32>
    %c0_26 = arith.constant 0 : index
    %48 = memref.load %arg3[%c0_26] : memref<14xf32, #tpu.memory_space<smem>>
    %49 = vector.broadcast %48 : f32 to vector<2x16xf32>
    %50 = arith.mulf %47, %49 : vector<2x16xf32>
    %51 = arith.addf %46, %50 : vector<2x16xf32>
    %52 = vector.extract_strided_slice %45 {offsets = [0, 0], sizes = [2, 16], strides = [1, 1]} : vector<2x22xf32> to vector<2x16xf32>
    %c7 = arith.constant 7 : index
    %53 = memref.load %arg3[%c7] : memref<14xf32, #tpu.memory_space<smem>>
    %54 = vector.broadcast %53 : f32 to vector<2x16xf32>
    %55 = arith.mulf %52, %54 : vector<2x16xf32>
    %56 = arith.addf %51, %55 : vector<2x16xf32>
    %57 = vector.extract_strided_slice %44 {offsets = [0, 1], sizes = [2, 16], strides = [1, 1]} : vector<2x22xf32> to vector<2x16xf32>
    %c1 = arith.constant 1 : index
    %58 = memref.load %arg3[%c1] : memref<14xf32, #tpu.memory_space<smem>>
    %59 = vector.broadcast %58 : f32 to vector<2x16xf32>
    %60 = arith.mulf %57, %59 : vector<2x16xf32>
    %61 = arith.addf %56, %60 : vector<2x16xf32>
    %62 = vector.extract_strided_slice %45 {offsets = [0, 1], sizes = [2, 16], strides = [1, 1]} : vector<2x22xf32> to vector<2x16xf32>
    %c8 = arith.constant 8 : index
    %63 = memref.load %arg3[%c8] : memref<14xf32, #tpu.memory_space<smem>>
    %64 = vector.broadcast %63 : f32 to vector<2x16xf32>
    %65 = arith.mulf %62, %64 : vector<2x16xf32>
    %66 = arith.addf %61, %65 : vector<2x16xf32>
    %67 = vector.extract_strided_slice %44 {offsets = [0, 2], sizes = [2, 16], strides = [1, 1]} : vector<2x22xf32> to vector<2x16xf32>
    %c2 = arith.constant 2 : index
    %68 = memref.load %arg3[%c2] : memref<14xf32, #tpu.memory_space<smem>>
    %69 = vector.broadcast %68 : f32 to vector<2x16xf32>
    %70 = arith.mulf %67, %69 : vector<2x16xf32>
    %71 = arith.addf %66, %70 : vector<2x16xf32>
    %72 = vector.extract_strided_slice %45 {offsets = [0, 2], sizes = [2, 16], strides = [1, 1]} : vector<2x22xf32> to vector<2x16xf32>
    %c9 = arith.constant 9 : index
    %73 = memref.load %arg3[%c9] : memref<14xf32, #tpu.memory_space<smem>>
    %74 = vector.broadcast %73 : f32 to vector<2x16xf32>
    %75 = arith.mulf %72, %74 : vector<2x16xf32>
    %76 = arith.addf %71, %75 : vector<2x16xf32>
    %77 = vector.extract_strided_slice %44 {offsets = [0, 3], sizes = [2, 16], strides = [1, 1]} : vector<2x22xf32> to vector<2x16xf32>
    %c3 = arith.constant 3 : index
    %78 = memref.load %arg3[%c3] : memref<14xf32, #tpu.memory_space<smem>>
    %79 = vector.broadcast %78 : f32 to vector<2x16xf32>
    %80 = arith.mulf %77, %79 : vector<2x16xf32>
    %81 = arith.addf %76, %80 : vector<2x16xf32>
    %82 = vector.extract_strided_slice %45 {offsets = [0, 3], sizes = [2, 16], strides = [1, 1]} : vector<2x22xf32> to vector<2x16xf32>
    %c10 = arith.constant 10 : index
    %83 = memref.load %arg3[%c10] : memref<14xf32, #tpu.memory_space<smem>>
    %84 = vector.broadcast %83 : f32 to vector<2x16xf32>
    %85 = arith.mulf %82, %84 : vector<2x16xf32>
    %86 = arith.addf %81, %85 : vector<2x16xf32>
    %87 = vector.extract_strided_slice %44 {offsets = [0, 4], sizes = [2, 16], strides = [1, 1]} : vector<2x22xf32> to vector<2x16xf32>
    %c4 = arith.constant 4 : index
    %88 = memref.load %arg3[%c4] : memref<14xf32, #tpu.memory_space<smem>>
    %89 = vector.broadcast %88 : f32 to vector<2x16xf32>
    %90 = arith.mulf %87, %89 : vector<2x16xf32>
    %91 = arith.addf %86, %90 : vector<2x16xf32>
    %92 = vector.extract_strided_slice %45 {offsets = [0, 4], sizes = [2, 16], strides = [1, 1]} : vector<2x22xf32> to vector<2x16xf32>
    %c11 = arith.constant 11 : index
    %93 = memref.load %arg3[%c11] : memref<14xf32, #tpu.memory_space<smem>>
    %94 = vector.broadcast %93 : f32 to vector<2x16xf32>
    %95 = arith.mulf %92, %94 : vector<2x16xf32>
    %96 = arith.addf %91, %95 : vector<2x16xf32>
    %97 = vector.extract_strided_slice %44 {offsets = [0, 5], sizes = [2, 16], strides = [1, 1]} : vector<2x22xf32> to vector<2x16xf32>
    %c5 = arith.constant 5 : index
    %98 = memref.load %arg3[%c5] : memref<14xf32, #tpu.memory_space<smem>>
    %99 = vector.broadcast %98 : f32 to vector<2x16xf32>
    %100 = arith.mulf %97, %99 : vector<2x16xf32>
    %101 = arith.addf %96, %100 : vector<2x16xf32>
    %102 = vector.extract_strided_slice %45 {offsets = [0, 5], sizes = [2, 16], strides = [1, 1]} : vector<2x22xf32> to vector<2x16xf32>
    %c12 = arith.constant 12 : index
    %103 = memref.load %arg3[%c12] : memref<14xf32, #tpu.memory_space<smem>>
    %104 = vector.broadcast %103 : f32 to vector<2x16xf32>
    %105 = arith.mulf %102, %104 : vector<2x16xf32>
    %106 = arith.addf %101, %105 : vector<2x16xf32>
    %107 = vector.extract_strided_slice %44 {offsets = [0, 6], sizes = [2, 16], strides = [1, 1]} : vector<2x22xf32> to vector<2x16xf32>
    %c6 = arith.constant 6 : index
    %108 = memref.load %arg3[%c6] : memref<14xf32, #tpu.memory_space<smem>>
    %109 = vector.broadcast %108 : f32 to vector<2x16xf32>
    %110 = arith.mulf %107, %109 : vector<2x16xf32>
    %111 = arith.addf %106, %110 : vector<2x16xf32>
    %112 = vector.extract_strided_slice %45 {offsets = [0, 6], sizes = [2, 16], strides = [1, 1]} : vector<2x22xf32> to vector<2x16xf32>
    %c13 = arith.constant 13 : index
    %113 = memref.load %arg3[%c13] : memref<14xf32, #tpu.memory_space<smem>>
    %114 = vector.broadcast %113 : f32 to vector<2x16xf32>
    %115 = arith.mulf %112, %114 : vector<2x16xf32>
    %116 = arith.addf %111, %115 : vector<2x16xf32>
    %117 = arith.negf %116 : vector<2x16xf32>
    %118 = math.exp %117 : vector<2x16xf32>
    %cst_27 = arith.constant 1.000000e+00 : f32
    %119 = vector.broadcast %cst_27 : f32 to vector<2x16xf32>
    %120 = arith.addf %119, %118 : vector<2x16xf32>
    %121 = arith.divf %119, %120 : vector<2x16xf32>
    %122 = vector.shape_cast %121 : vector<2x16xf32> to vector<2x16x1xf32>
    %123 = vector.broadcast %122 : vector<2x16x1xf32> to vector<2x16x192xf32>
    %124 = arith.mulf %38, %123 : vector<2x16x192xf32>
    %125 = tpu.iota {dimensions = array<i32: 0>} : vector<32x128xi32>
    %c16_i32 = arith.constant 16 : i32
    %c0_i32 = arith.constant 0 : i32
    %126 = arith.cmpi eq, %c16_i32, %c0_i32 : i32
    %c1_i32 = arith.constant 1 : i32
    %127 = arith.select %126, %c1_i32, %c16_i32 : i32
    %128 = vector.broadcast %127 : i32 to vector<32x128xi32>
    %129 = arith.remsi %125, %128 : vector<32x128xi32>
    %c0_i32_28 = arith.constant 0 : i32
    %130 = vector.broadcast %c0_i32_28 : i32 to vector<32x128xi32>
    %131 = arith.cmpi ne, %129, %130 : vector<32x128xi32>
    %c0_i32_29 = arith.constant 0 : i32
    %132 = vector.broadcast %c0_i32_29 : i32 to vector<32x128xi32>
    %133 = arith.cmpi slt, %129, %132 : vector<32x128xi32>
    %c0_i32_30 = arith.constant 0 : i32
    %134 = arith.cmpi slt, %127, %c0_i32_30 : i32
    %135 = vector.broadcast %134 : i1 to vector<32x128xi1>
    %136 = vector.broadcast %135 : vector<32x128xi1> to vector<32x128xi1>
    %137 = arith.xori %133, %136 : vector<32x128xi1>
    %138 = arith.andi %137, %131 : vector<32x128xi1>
    %139 = vector.broadcast %127 : i32 to vector<32x128xi32>
    %140 = arith.addi %129, %139 : vector<32x128xi32>
    %141 = arith.select %138, %140, %129 : vector<32x128xi1>, vector<32x128xi32>
    %c0_i32_31 = arith.constant 0 : i32
    %142 = vector.broadcast %c0_i32_31 : i32 to vector<32x128xi32>
    %143 = arith.cmpi ne, %141, %142 : vector<32x128xi32>
    %c15_i32 = arith.constant 15 : i32
    %144 = vector.broadcast %c15_i32 : i32 to vector<32x128xi32>
    %145 = arith.cmpi ne, %141, %144 : vector<32x128xi32>
    %146 = vector.shape_cast %124 : vector<2x16x192xf32> to vector<32x192xf32>
    %147 = arith.truncf %146 : vector<32x192xf32> to vector<32x192xbf16>
    %c0_32 = arith.constant 0 : index
    %c0_33 = arith.constant 0 : index
    %c0_34 = arith.constant 0 : index
    %148 = vector.load %arg8[%c0_32, %c0_33, %c0_34] : memref<3x192x128xbf16, #tpu.memory_space<vmem>>, vector<1x192x128xbf16>
    %149 = vector.shape_cast %148 : vector<1x192x128xbf16> to vector<192x128xbf16>
    %cst_35 = arith.constant dense<0.000000e+00> : vector<32x128xf32>
    %150 = tpu.matmul %147, %149, %cst_35 {dimension_numbers = #tpu.dot_dimension_numbers<[1], [0], [0], [1], [0, 0, 1, 1], [], []>} : vector<32x192xbf16>, vector<192x128xbf16>, vector<32x128xf32> -> vector<32x128xf32>
    %c1_36 = arith.constant 1 : index
    %c0_37 = arith.constant 0 : index
    %c0_38 = arith.constant 0 : index
    %151 = vector.load %arg8[%c1_36, %c0_37, %c0_38] : memref<3x192x128xbf16, #tpu.memory_space<vmem>>, vector<1x192x128xbf16>
    %152 = vector.shape_cast %151 : vector<1x192x128xbf16> to vector<192x128xbf16>
    %cst_39 = arith.constant dense<0.000000e+00> : vector<32x128xf32>
    %153 = tpu.matmul %147, %152, %cst_39 {dimension_numbers = #tpu.dot_dimension_numbers<[1], [0], [0], [1], [0, 0, 1, 1], [], []>} : vector<32x192xbf16>, vector<192x128xbf16>, vector<32x128xf32> -> vector<32x128xf32>
    %c2_40 = arith.constant 2 : index
    %c0_41 = arith.constant 0 : index
    %c0_42 = arith.constant 0 : index
    %154 = vector.load %arg8[%c2_40, %c0_41, %c0_42] : memref<3x192x128xbf16, #tpu.memory_space<vmem>>, vector<1x192x128xbf16>
    %155 = vector.shape_cast %154 : vector<1x192x128xbf16> to vector<192x128xbf16>
    %cst_43 = arith.constant dense<0.000000e+00> : vector<32x128xf32>
    %156 = tpu.matmul %147, %155, %cst_43 {dimension_numbers = #tpu.dot_dimension_numbers<[1], [0], [0], [1], [0, 0, 1, 1], [], []>} : vector<32x192xbf16>, vector<192x128xbf16>, vector<32x128xf32> -> vector<32x128xf32>
    %c1_i32_44 = arith.constant 1 : i32
    %157 = tpu.dynamic_rotate %150 by %c1_i32_44 dim 0 : vector<32x128xf32>, i32 -> vector<32x128xf32>
    %c31_i32 = arith.constant 31 : i32
    %158 = tpu.dynamic_rotate %156 by %c31_i32 dim 0 : vector<32x128xf32>, i32 -> vector<32x128xf32>
    %cst_45 = arith.constant 0.000000e+00 : f32
    %159 = vector.broadcast %cst_45 : f32 to vector<32x128xf32>
    %160 = arith.select %143, %157, %159 : vector<32x128xi1>, vector<32x128xf32>
    %161 = arith.addf %153, %160 : vector<32x128xf32>
    %cst_46 = arith.constant 0.000000e+00 : f32
    %162 = vector.broadcast %cst_46 : f32 to vector<32x128xf32>
    %163 = arith.select %145, %158, %162 : vector<32x128xi1>, vector<32x128xf32>
    %164 = arith.addf %161, %163 : vector<32x128xf32>
    %165 = vector.broadcast %2 : vector<1x128xf32> to vector<32x128xf32>
    %166 = arith.addf %164, %165 : vector<32x128xf32>
    %cst_47 = arith.constant 0.000000e+00 : f32
    %167 = vector.broadcast %cst_47 : f32 to vector<32x128xf32>
    %168 = arith.maximumf %166, %167 : vector<32x128xf32>
    %169 = arith.truncf %168 : vector<32x128xf32> to vector<32x128xbf16>
    %c0_48 = arith.constant 0 : index
    %c0_49 = arith.constant 0 : index
    %c0_50 = arith.constant 0 : index
    %170 = vector.load %arg9[%c0_48, %c0_49, %c0_50] : memref<3x128x128xbf16, #tpu.memory_space<vmem>>, vector<1x128x128xbf16>
    %171 = vector.shape_cast %170 : vector<1x128x128xbf16> to vector<128x128xbf16>
    %cst_51 = arith.constant dense<0.000000e+00> : vector<32x128xf32>
    %172 = tpu.matmul %169, %171, %cst_51 {dimension_numbers = #tpu.dot_dimension_numbers<[1], [0], [0], [1], [0, 0, 1, 1], [], []>} : vector<32x128xbf16>, vector<128x128xbf16>, vector<32x128xf32> -> vector<32x128xf32>
    %c1_52 = arith.constant 1 : index
    %c0_53 = arith.constant 0 : index
    %c0_54 = arith.constant 0 : index
    %173 = vector.load %arg9[%c1_52, %c0_53, %c0_54] : memref<3x128x128xbf16, #tpu.memory_space<vmem>>, vector<1x128x128xbf16>
    %174 = vector.shape_cast %173 : vector<1x128x128xbf16> to vector<128x128xbf16>
    %cst_55 = arith.constant dense<0.000000e+00> : vector<32x128xf32>
    %175 = tpu.matmul %169, %174, %cst_55 {dimension_numbers = #tpu.dot_dimension_numbers<[1], [0], [0], [1], [0, 0, 1, 1], [], []>} : vector<32x128xbf16>, vector<128x128xbf16>, vector<32x128xf32> -> vector<32x128xf32>
    %c2_56 = arith.constant 2 : index
    %c0_57 = arith.constant 0 : index
    %c0_58 = arith.constant 0 : index
    %176 = vector.load %arg9[%c2_56, %c0_57, %c0_58] : memref<3x128x128xbf16, #tpu.memory_space<vmem>>, vector<1x128x128xbf16>
    %177 = vector.shape_cast %176 : vector<1x128x128xbf16> to vector<128x128xbf16>
    %cst_59 = arith.constant dense<0.000000e+00> : vector<32x128xf32>
    %178 = tpu.matmul %169, %177, %cst_59 {dimension_numbers = #tpu.dot_dimension_numbers<[1], [0], [0], [1], [0, 0, 1, 1], [], []>} : vector<32x128xbf16>, vector<128x128xbf16>, vector<32x128xf32> -> vector<32x128xf32>
    %c1_i32_60 = arith.constant 1 : i32
    %179 = tpu.dynamic_rotate %172 by %c1_i32_60 dim 0 : vector<32x128xf32>, i32 -> vector<32x128xf32>
    %c31_i32_61 = arith.constant 31 : i32
    %180 = tpu.dynamic_rotate %178 by %c31_i32_61 dim 0 : vector<32x128xf32>, i32 -> vector<32x128xf32>
    %cst_62 = arith.constant 0.000000e+00 : f32
    %181 = vector.broadcast %cst_62 : f32 to vector<32x128xf32>
    %182 = arith.select %143, %179, %181 : vector<32x128xi1>, vector<32x128xf32>
    %183 = arith.addf %175, %182 : vector<32x128xf32>
    %cst_63 = arith.constant 0.000000e+00 : f32
    %184 = vector.broadcast %cst_63 : f32 to vector<32x128xf32>
    %185 = arith.select %145, %180, %184 : vector<32x128xi1>, vector<32x128xf32>
    %186 = arith.addf %183, %185 : vector<32x128xf32>
    %187 = vector.broadcast %3 : vector<1x128xf32> to vector<32x128xf32>
    %188 = arith.addf %186, %187 : vector<32x128xf32>
    %cst_64 = arith.constant 0.000000e+00 : f32
    %189 = vector.broadcast %cst_64 : f32 to vector<32x128xf32>
    %190 = arith.maximumf %188, %189 : vector<32x128xf32>
    %191 = vector.shape_cast %190 : vector<32x128xf32> to vector<2x16x128xf32>
    %cst_65 = arith.constant dense<0xFF800000> : vector<2x128xf32>
    %192 = vector.multi_reduction <maximumf>, %191, %cst_65 [1] : vector<2x16x128xf32> to vector<2x128xf32>
    %c0_66 = arith.constant 0 : index
    %c0_67 = arith.constant 0 : index
    %193 = vector.load %arg10[%c0_66, %c0_67] : memref<128x256xf32, #tpu.memory_space<vmem>>, vector<128x256xf32>
    %cst_68 = arith.constant dense<0.000000e+00> : vector<2x256xf32>
    %194 = tpu.matmul %192, %193, %cst_68 {dimension_numbers = #tpu.dot_dimension_numbers<[1], [0], [0], [1], [0, 0, 1, 1], [], []>} : vector<2x128xf32>, vector<128x256xf32>, vector<2x256xf32> -> vector<2x256xf32>
    %195 = vector.broadcast %4 : vector<1x256xf32> to vector<2x256xf32>
    %196 = arith.addf %194, %195 : vector<2x256xf32>
    %cst_69 = arith.constant 0.000000e+00 : f32
    %197 = vector.broadcast %cst_69 : f32 to vector<2x256xf32>
    %198 = arith.maximumf %196, %197 : vector<2x256xf32>
    %c0_70 = arith.constant 0 : index
    %c0_71 = arith.constant 0 : index
    %199 = vector.load %arg11[%c0_70, %c0_71] : memref<256x128xf32, #tpu.memory_space<vmem>>, vector<256x128xf32>
    %cst_72 = arith.constant dense<0.000000e+00> : vector<2x128xf32>
    %200 = tpu.matmul %198, %199, %cst_72 {dimension_numbers = #tpu.dot_dimension_numbers<[1], [0], [0], [1], [0, 0, 1, 1], [], []>} : vector<2x256xf32>, vector<256x128xf32>, vector<2x128xf32> -> vector<2x128xf32>
    %201 = vector.broadcast %5 : vector<1x128xf32> to vector<2x128xf32>
    %202 = arith.addf %200, %201 : vector<2x128xf32>
    %cst_73 = arith.constant 0.000000e+00 : f32
    %203 = vector.broadcast %cst_73 : f32 to vector<2x128xf32>
    %204 = arith.maximumf %202, %203 : vector<2x128xf32>
    %205 = tpu.concatenate %13, %204 in 1 : vector<2x128xf32>, vector<2x128xf32> -> vector<2x256xf32>
    %c0_74 = arith.constant 0 : index
    %c0_75 = arith.constant 0 : index
    %206 = vector.load %arg12[%c0_74, %c0_75] : memref<256x256xf32, #tpu.memory_space<vmem>>, vector<256x256xf32>
    %cst_76 = arith.constant dense<0.000000e+00> : vector<2x256xf32>
    %207 = tpu.matmul %205, %206, %cst_76 {dimension_numbers = #tpu.dot_dimension_numbers<[1], [0], [0], [1], [0, 0, 1, 1], [], []>} : vector<2x256xf32>, vector<256x256xf32>, vector<2x256xf32> -> vector<2x256xf32>
    %208 = vector.broadcast %7 : vector<1x256xf32> to vector<2x256xf32>
    %209 = arith.addf %207, %208 : vector<2x256xf32>
    %cst_77 = arith.constant 0.000000e+00 : f32
    %210 = vector.broadcast %cst_77 : f32 to vector<2x256xf32>
    %211 = arith.maximumf %209, %210 : vector<2x256xf32>
    %c0_78 = arith.constant 0 : index
    %c0_79 = arith.constant 0 : index
    %212 = vector.load %arg13[%c0_78, %c0_79] : memref<256x128xf32, #tpu.memory_space<vmem>>, vector<256x128xf32>
    %cst_80 = arith.constant dense<0.000000e+00> : vector<2x128xf32>
    %213 = tpu.matmul %211, %212, %cst_80 {dimension_numbers = #tpu.dot_dimension_numbers<[1], [0], [0], [1], [0, 0, 1, 1], [], []>} : vector<2x256xf32>, vector<256x128xf32>, vector<2x128xf32> -> vector<2x128xf32>
    %214 = vector.broadcast %8 : vector<1x128xf32> to vector<2x128xf32>
    %215 = arith.addf %213, %214 : vector<2x128xf32>
    %c0_81 = arith.constant 0 : index
    %c0_82 = arith.constant 0 : index
    %216 = vector.load %arg15[%c0_81, %c0_82] : memref<2x128xf32, #tpu.memory_space<vmem>>, vector<2x128xf32>
    tpu.vector_store %arg15[%c0_81, %c0_82], %215 {strides = array<i32>} : memref<2x128xf32, #tpu.memory_space<vmem>>, vector<2x128xf32>,
    return
  }
  func.func @transform_0(%arg0: i32) -> (i32, i32) {
    %c0_i32 = arith.constant 0 : i32
    %c0_i32_0 = arith.constant 0 : i32
    return %arg0, %c0_i32 : i32, i32
  }
  func.func @transform_1(%arg0: i32) -> (i32, i32) {
    %c0_i32 = arith.constant 0 : i32
    %c0_i32_0 = arith.constant 0 : i32
    return %arg0, %c0_i32 : i32, i32
  }
  func.func @transform_2(%arg0: i32) -> i32 {
    %c0_i32 = arith.constant 0 : i32
    %c0_i32_0 = arith.constant 0 : i32
    return %c0_i32 : i32
  }
  func.func @transform_3(%arg0: i32) -> (i32, i32) {
    %c0_i32 = arith.constant 0 : i32
    %c0_i32_0 = arith.constant 0 : i32
    %c0_i32_1 = arith.constant 0 : i32
    return %c0_i32, %c0_i32_0 : i32, i32
  }
  func.func @transform_4(%arg0: i32) -> (i32, i32) {
    %c0_i32 = arith.constant 0 : i32
    %c0_i32_0 = arith.constant 0 : i32
    %c0_i32_1 = arith.constant 0 : i32
    return %c0_i32, %c0_i32_0 : i32, i32
  }
  func.func @transform_5(%arg0: i32) -> (i32, i32) {
    %c0_i32 = arith.constant 0 : i32
    %c0_i32_0 = arith.constant 0 : i32
    %c0_i32_1 = arith.constant 0 : i32
    return %c0_i32, %c0_i32_0 : i32, i32
  }
  func.func @transform_6(%arg0: i32) -> (i32, i32) {
    %c0_i32 = arith.constant 0 : i32
    %c0_i32_0 = arith.constant 0 : i32
    %c0_i32_1 = arith.constant 0 : i32
    return %c0_i32, %c0_i32_0 : i32, i32
  }
  func.func @transform_7(%arg0: i32) -> (i32, i32, i32) {
    %c0_i32 = arith.constant 0 : i32
    %c0_i32_0 = arith.constant 0 : i32
    %c0_i32_1 = arith.constant 0 : i32
    %c0_i32_2 = arith.constant 0 : i32
    return %c0_i32, %c0_i32_0, %c0_i32_1 : i32, i32, i32
  }
  func.func @transform_8(%arg0: i32) -> (i32, i32, i32) {
    %c0_i32 = arith.constant 0 : i32
    %c0_i32_0 = arith.constant 0 : i32
    %c0_i32_1 = arith.constant 0 : i32
    %c0_i32_2 = arith.constant 0 : i32
    return %c0_i32, %c0_i32_0, %c0_i32_1 : i32, i32, i32
  }
  func.func @transform_9(%arg0: i32) -> (i32, i32) {
    %c0_i32 = arith.constant 0 : i32
    %c0_i32_0 = arith.constant 0 : i32
    %c0_i32_1 = arith.constant 0 : i32
    return %c0_i32, %c0_i32_0 : i32, i32
  }
  func.func @transform_10(%arg0: i32) -> (i32, i32) {
    %c0_i32 = arith.constant 0 : i32
    %c0_i32_0 = arith.constant 0 : i32
    %c0_i32_1 = arith.constant 0 : i32
    return %c0_i32, %c0_i32_0 : i32, i32
  }
  func.func @transform_11(%arg0: i32) -> (i32, i32) {
    %c0_i32 = arith.constant 0 : i32
    %c0_i32_0 = arith.constant 0 : i32
    %c0_i32_1 = arith.constant 0 : i32
    return %c0_i32, %c0_i32_0 : i32, i32
  }
  func.func @transform_12(%arg0: i32) -> (i32, i32) {
    %c0_i32 = arith.constant 0 : i32
    %c0_i32_0 = arith.constant 0 : i32
    %c0_i32_1 = arith.constant 0 : i32
    return %c0_i32, %c0_i32_0 : i32, i32
  }
  func.func @transform_13(%arg0: i32) -> (i32, i32) {
    %c0_i32 = arith.constant 0 : i32
    %c0_i32_0 = arith.constant 0 : i32
    %c0_i32_1 = arith.constant 0 : i32
    return %c0_i32, %c0_i32_0 : i32, i32
  }
  func.func @transform_14(%arg0: i32) -> (i32, i32) {
    %c0_i32 = arith.constant 0 : i32
    %c0_i32_0 = arith.constant 0 : i32
    return %arg0, %c0_i32 : i32, i32
  }
}

</mosaic_0001>

<llo_original>
// kernel: tpu_custom_call.1
$region0: #{tpu_custom_call.1}
  #allocation0 [shape = 'u32[]', space=smem, size = 0x4, offset = 0x4, fixed_abs, tag = 'smem constant byte address 0x4 - core index']
  #allocation1 [shape = 'u32[72,128]{1,0:T(1,128)}', space=vmem, size = 0x9000, scoped, tag = 'internal scratch']
  %s0 = inlined_call_operand.hbm [shape: f32[2,32], index: 0, kind: input, shape index: {}]
  %s1 = inlined_call_operand.vmem [shape: f32[32,8], index: 1, kind: input, shape index: {}]
  %s2 = inlined_call_operand.hbm [shape: f32[14], index: 2, kind: input, shape index: {}]
  %s3 = inlined_call_operand.hbm [shape: f32[32,128], index: 3, kind: input, shape index: {}]
  %s4 = inlined_call_operand.vmem [shape: f32[8,192], index: 4, kind: input, shape index: {}]
  %s5 = inlined_call_operand.vmem [shape: f32[192,12], index: 5, kind: input, shape index: {}]
  %s6 = inlined_call_operand.hbm [shape: f32[12,192], index: 6, kind: input, shape index: {}]
  %s7 = inlined_call_operand.hbm [shape: bf16[3,192,128], index: 7, kind: input, shape index: {}]
  %s8 = inlined_call_operand.hbm [shape: bf16[3,128,128], index: 8, kind: input, shape index: {}]
  %s9 = inlined_call_operand.vmem [shape: f32[128,256], index: 9, kind: input, shape index: {}]
  %s10 = inlined_call_operand.hbm [shape: f32[256,128], index: 10, kind: input, shape index: {}]
  %s11 = inlined_call_operand.hbm [shape: f32[256,256], index: 11, kind: input, shape index: {}]
  %s12 = inlined_call_operand.hbm [shape: f32[256,128], index: 12, kind: input, shape index: {}]
  %s13 = inlined_call_operand.hbm [shape: f32[8,256], index: 13, kind: input, shape index: {}]
  %s14 = inlined_call_operand.hbm [shape: f32[2,128], index: 14, kind: output, shape index: {}]
  %s15 = sld [smem:[#allocation0]]
  $region106: #{tpu_custom_call.1} parent=0
    _
  %s17 = ssub.s32 1, %s15
  %s18 = scalar_select 0, %s17, %s15
  $region1: #{tpu_custom_call.1} parent=0
    #allocation2 [shape = 'u8[1024]{0}', space=vmem, size = 0x400, scoped, tag = 'input window, operand 0, single buffered']
    #allocation3 [shape = 's32[1]{0}', space=sflag, size = 0x4, scoped, tag = 'scoped memory for tpu_custom_call.1']
    #allocation4 [shape = 's32[1]{0}', space=sflag, size = 0x4, scoped, tag = 'scoped memory for tpu_custom_call.1']
    #allocation5 [shape = 's32[1]{0}', space=sflag, size = 0x4, scoped, tag = 'scoped memory for tpu_custom_call.1']
    #allocation6 [shape = 'u8[512]{0}', space=smem, size = 0x200, scoped, tag = 'input window, operand 2, single buffered']
    #allocation7 [shape = 'u8[16384]{0}', space=vmem, size = 0x4000, scoped, tag = 'input window, operand 3, single buffered']
    #allocation8 [shape = 's32[1]{0}', space=sflag, size = 0x4, scoped, tag = 'scoped memory for tpu_custom_call.1']
    #allocation9 [shape = 'u8[16384]{0}', space=vmem, size = 0x4000, scoped, tag = 'input window, operand 6, single buffered']
    #allocation10 [shape = 'u8[147456]{0}', space=vmem, size = 0x24000, scoped, tag = 'input window, operand 7, single buffered']
    #allocation11 [shape = 's32[1]{0}', space=sflag, size = 0x4, scoped, tag = 'scoped memory for tpu_custom_call.1']
    #allocation12 [shape = 'u8[98304]{0}', space=vmem, size = 0x18000, scoped, tag = 'input window, operand 8, single buffered']
    #allocation13 [shape = 'u8[131072]{0}', space=vmem, size = 0x20000, scoped, tag = 'input window, operand 10, single buffered']
    #allocation14 [shape = 's32[1]{0}', space=sflag, size = 0x4, scoped, tag = 'scoped memory for tpu_custom_call.1']
    #allocation15 [shape = 'u8[262144]{0}', space=vmem, size = 0x40000, scoped, tag = 'input window, operand 11, single buffered']
    #allocation16 [shape = 'u8[131072]{0}', space=vmem, size = 0x20000, scoped, tag = 'input window, operand 12, single buffered']
    #allocation17 [shape = 's32[1]{0}', space=sflag, size = 0x4, scoped, tag = 'scoped memory for tpu_custom_call.1']
    #allocation18 [shape = 'u8[8192]{0}', space=vmem, size = 0x2000, scoped, tag = 'input window, operand 13, single buffered']
    #allocation19 [shape = 'u8[1024]{0}', space=vmem, size = 0x400, scoped, tag = 'output window, operand 0, single buffered']
    %19 = vsyncpa [#allocation3], 0
    %20 = vsyncpa [#allocation5], 0
    %21 = vsyncpa [#allocation8], 0
    %22 = vsyncpa [#allocation11], 0
    %23 = vsyncpa [#allocation14], 0
    %24 = vsyncpa [#allocation17], 0
    %25 = vsyncpa [#allocation4], 0
    // Predicated region
    $region2: #{tpu_custom_call.1} parent=1 // pred_check
      _
    $region3: #{tpu_custom_call.1} parent=1 // pred_check_branch
      %27 = sbr.rel (0) target = $region5
    $region4: #{tpu_custom_call.1} parent=1 // pred_region
      %29 = vsyncadd [#allocation3], 0
      %s31 = sshll.u32 %s0, 4
      %s32 = int_to_ptr.hbm [resolvable:$true] %s31
      %s33 = sshll.u32 [#allocation2], 4
      %s34 = int_to_ptr.vmem [resolvable:$true] %s33
      %36 = dma.hbm_to_vmem [thread:$0]  %s32, 32, %s34, [#allocation3]
    $region5: #{tpu_custom_call.1} parent=1 // pred_fallthru
      _
    // Predicated region
    $region6: #{tpu_custom_call.1} parent=1 // pred_check
      _
    $region7: #{tpu_custom_call.1} parent=1 // pred_check_branch
      %38 = sbr.rel (0) target = $region9
    $region8: #{tpu_custom_call.1} parent=1 // pred_region
      _
    $region9: #{tpu_custom_call.1} parent=1 // pred_fallthru
      _
    // Predicated region
    $region10: #{tpu_custom_call.1} parent=1 // pred_check
      _
    $region11: #{tpu_custom_call.1} parent=1 // pred_check_branch
      %40 = sbr.rel (0) target = $region13
    $region12: #{tpu_custom_call.1} parent=1 // pred_region
      %42 = vsyncadd [#allocation5], 0
      %s44 = sshll.u32 %s2, 4
      %s45 = int_to_ptr.hbm [resolvable:$true] %s44
      %47 = dma.hbm_to_smem %s45, 16, [#allocation6], [#allocation5]
    $region13: #{tpu_custom_call.1} parent=1 // pred_fallthru
      _
    // Predicated region
    $region14: #{tpu_custom_call.1} parent=1 // pred_check
      _
    $region15: #{tpu_custom_call.1} parent=1 // pred_check_branch
      %49 = sbr.rel (0) target = $region17
    $region16: #{tpu_custom_call.1} parent=1 // pred_region
      %51 = vsyncadd [#allocation8], 0
      %s52 = sshll.u32 %s3, 4
      %s53 = int_to_ptr.hbm [resolvable:$true] %s52
      %s54 = sshll.u32 [#allocation7], 4
      %s55 = int_to_ptr.vmem [resolvable:$true] %s54
      %60 = dma.hbm_to_vmem [thread:$0]  %s53, 512, %s55, [#allocation8], 128, 128, 8
    $region17: #{tpu_custom_call.1} parent=1 // pred_fallthru
      _
    // Predicated region
    $region18: #{tpu_custom_call.1} parent=1 // pred_check
      _
    $region19: #{tpu_custom_call.1} parent=1 // pred_check_branch
      %62 = sbr.rel (0) target = $region21
    $region20: #{tpu_custom_call.1} parent=1 // pred_region
      _
    $region21: #{tpu_custom_call.1} parent=1 // pred_fallthru
      _
    // Predicated region
    $region22: #{tpu_custom_call.1} parent=1 // pred_check
      _
    $region23: #{tpu_custom_call.1} parent=1 // pred_check_branch
      %64 = sbr.rel (0) target = $region25
    $region24: #{tpu_custom_call.1} parent=1 // pred_region
      _
    $region25: #{tpu_custom_call.1} parent=1 // pred_fallthru
      _
    // Predicated region
    $region26: #{tpu_custom_call.1} parent=1 // pred_check
      _
    $region27: #{tpu_custom_call.1} parent=1 // pred_check_branch
      %66 = sbr.rel (0) target = $region29
    $region28: #{tpu_custom_call.1} parent=1 // pred_region
      %68 = vsyncadd [#allocation8], 0
      %s69 = sshll.u32 %s6, 4
      %s70 = int_to_ptr.hbm [resolvable:$true] %s69
      %s71 = sshll.u32 [#allocation9], 4
      %s72 = int_to_ptr.vmem [resolvable:$true] %s71
      %77 = dma.hbm_to_vmem [thread:$0]  %s70, 512, %s72, [#allocation8], 256, 256, 16
    $region29: #{tpu_custom_call.1} parent=1 // pred_fallthru
      _
    // Predicated region
    $region30: #{tpu_custom_call.1} parent=1 // pred_check
      _
    $region31: #{tpu_custom_call.1} parent=1 // pred_check_branch
      %79 = sbr.rel (0) target = $region33
    $region32: #{tpu_custom_call.1} parent=1 // pred_region
      %81 = vsyncadd [#allocation11], 0
      %s82 = sshll.u32 %s7, 4
      %s83 = int_to_ptr.hbm [resolvable:$true] %s82
      %s84 = sshll.u32 [#allocation10], 4
      %s85 = int_to_ptr.vmem [resolvable:$true] %s84
      %90 = dma.hbm_to_vmem [thread:$0]  %s83, 4608, %s85, [#allocation11], 64, 64, 4
    $region33: #{tpu_custom_call.1} parent=1 // pred_fallthru
      _
    // Predicated region
    $region34: #{tpu_custom_call.1} parent=1 // pred_check
      _
    $region35: #{tpu_custom_call.1} parent=1 // pred_check_branch
      %92 = sbr.rel (0) target = $region37
    $region36: #{tpu_custom_call.1} parent=1 // pred_region
      %94 = vsyncadd [#allocation11], 0
      %s95 = sshll.u32 %s8, 4
      %s96 = int_to_ptr.hbm [resolvable:$true] %s95
      %s97 = sshll.u32 [#allocation12], 4
      %s98 = int_to_ptr.vmem [resolvable:$true] %s97
      %103 = dma.hbm_to_vmem [thread:$0]  %s96, 3072, %s98, [#allocation11], 64, 64, 4
    $region37: #{tpu_custom_call.1} parent=1 // pred_fallthru
      _
    // Predicated region
    $region38: #{tpu_custom_call.1} parent=1 // pred_check
      _
    $region39: #{tpu_custom_call.1} parent=1 // pred_check_branch
      %105 = sbr.rel (0) target = $region41
    $region40: #{tpu_custom_call.1} parent=1 // pred_region
      _
    $region41: #{tpu_custom_call.1} parent=1 // pred_fallthru
      _
    // Predicated region
    $region42: #{tpu_custom_call.1} parent=1 // pred_check
      _
    $region43: #{tpu_custom_call.1} parent=1 // pred_check_branch
      %107 = sbr.rel (0) target = $region45
    $region44: #{tpu_custom_call.1} parent=1 // pred_region
      %109 = vsyncadd [#allocation14], 0
      %s110 = sshll.u32 %s10, 4
      %s111 = int_to_ptr.hbm [resolvable:$true] %s110
      %s112 = sshll.u32 [#allocation13], 4
      %s113 = int_to_ptr.vmem [resolvable:$true] %s112
      %118 = dma.hbm_to_vmem [thread:$0]  %s111, 4096, %s113, [#allocation14], 128, 128, 8
    $region45: #{tpu_custom_call.1} parent=1 // pred_fallthru
      _
    // Predicated region
    $region46: #{tpu_custom_call.1} parent=1 // pred_check
      _
    $region47: #{tpu_custom_call.1} parent=1 // pred_check_branch
      %120 = sbr.rel (0) target = $region49
    $region48: #{tpu_custom_call.1} parent=1 // pred_region
      %122 = vsyncadd [#allocation14], 0
      %s123 = sshll.u32 %s11, 4
      %s124 = int_to_ptr.hbm [resolvable:$true] %s123
      %s125 = sshll.u32 [#allocation15], 4
      %s126 = int_to_ptr.vmem [resolvable:$true] %s125
      %131 = dma.hbm_to_vmem [thread:$0]  %s124, 8192, %s126, [#allocation14], 256, 256, 16
    $region49: #{tpu_custom_call.1} parent=1 // pred_fallthru
      _
    // Predicated region
    $region50: #{tpu_custom_call.1} parent=1 // pred_check
      _
    $region51: #{tpu_custom_call.1} parent=1 // pred_check_branch
      %133 = sbr.rel (0) target = $region53
    $region52: #{tpu_custom_call.1} parent=1 // pred_region
      %135 = vsyncadd [#allocation17], 0
      %s136 = sshll.u32 %s12, 4
      %s137 = int_to_ptr.hbm [resolvable:$true] %s136
      %s138 = sshll.u32 [#allocation16], 4
      %s139 = int_to_ptr.vmem [resolvable:$true] %s138
      %144 = dma.hbm_to_vmem [thread:$0]  %s137, 4096, %s139, [#allocation17], 128, 128, 8
    $region53: #{tpu_custom_call.1} parent=1 // pred_fallthru
      _
    // Predicated region
    $region54: #{tpu_custom_call.1} parent=1 // pred_check
      _
    $region55: #{tpu_custom_call.1} parent=1 // pred_check_branch
      %146 = sbr.rel (0) target = $region57
    $region56: #{tpu_custom_call.1} parent=1 // pred_region
      %148 = vsyncadd [#allocation17], 0
      %s150 = sshll.u32 %s13, 4
      %s151 = int_to_ptr.hbm [resolvable:$true] %s150
      %s152 = sshll.u32 [#allocation18], 4
      %s153 = int_to_ptr.vmem [resolvable:$true] %s152
      %155 = dma.hbm_to_vmem [thread:$0]  %s151, 256, %s153, [#allocation17]
    $region57: #{tpu_custom_call.1} parent=1 // pred_fallthru
      _
    // Predicated region
    $region58: #{tpu_custom_call.1} parent=1 // pred_check
      _
    $region59: #{tpu_custom_call.1} parent=1 // pred_check_branch
      %157 = sbr.rel (0) target = $region61
    $region60: #{tpu_custom_call.1} parent=1 // pred_region
      %159 = dma.done [#allocation3], 32
    $region61: #{tpu_custom_call.1} parent=1 // pred_fallthru
      _
    // Predicated region
    $region62: #{tpu_custom_call.1} parent=1 // pred_check
      _
    $region63: #{tpu_custom_call.1} parent=1 // pred_check_branch
      %161 = sbr.rel (0) target = $region65
    $region64: #{tpu_custom_call.1} parent=1 // pred_region
      %163 = dma.done [#allocation5], 16
    $region65: #{tpu_custom_call.1} parent=1 // pred_fallthru
      _
    // Predicated region
    $region66: #{tpu_custom_call.1} parent=1 // pred_check
      _
    $region67: #{tpu_custom_call.1} parent=1 // pred_check_branch
      %165 = sbr.rel (0) target = $region69
    $region68: #{tpu_custom_call.1} parent=1 // pred_region
      %167 = dma.done [#allocation8], 512
    $region69: #{tpu_custom_call.1} parent=1 // pred_fallthru
      _
    // Predicated region
    $region70: #{tpu_custom_call.1} parent=1 // pred_check
      _
    $region71: #{tpu_custom_call.1} parent=1 // pred_check_branch
      %169 = sbr.rel (0) target = $region73
    $region72: #{tpu_custom_call.1} parent=1 // pred_region
      %171 = dma.done [#allocation8], 512
    $region73: #{tpu_custom_call.1} parent=1 // pred_fallthru
      _
    // Predicated region
    $region74: #{tpu_custom_call.1} parent=1 // pred_check
      _
    $region75: #{tpu_custom_call.1} parent=1 // pred_check_branch
      %173 = sbr.rel (0) target = $region77
    $region76: #{tpu_custom_call.1} parent=1 // pred_region
      %175 = dma.done [#allocation11], 4608
    $region77: #{tpu_custom_call.1} parent=1 // pred_fallthru
      _
    // Predicated region
    $region78: #{tpu_custom_call.1} parent=1 // pred_check
      _
    $region79: #{tpu_custom_call.1} parent=1 // pred_check_branch
      %177 = sbr.rel (0) target = $region81
    $region80: #{tpu_custom_call.1} parent=1 // pred_region
      %179 = dma.done [#allocation11], 3072
    $region81: #{tpu_custom_call.1} parent=1 // pred_fallthru
      _
    // Predicated region
    $region82: #{tpu_custom_call.1} parent=1 // pred_check
      _
    $region83: #{tpu_custom_call.1} parent=1 // pred_check_branch
      %181 = sbr.rel (0) target = $region85
    $region84: #{tpu_custom_call.1} parent=1 // pred_region
      %183 = dma.done [#allocation14], 4096
    $region85: #{tpu_custom_call.1} parent=1 // pred_fallthru
      _
    // Predicated region
    $region86: #{tpu_custom_call.1} parent=1 // pred_check
      _
    $region87: #{tpu_custom_call.1} parent=1 // pred_check_branch
      %185 = sbr.rel (0) target = $region89
    $region88: #{tpu_custom_call.1} parent=1 // pred_region
      %187 = dma.done [#allocation14], 8192
    $region89: #{tpu_custom_call.1} parent=1 // pred_fallthru
      _
    // Predicated region
    $region90: #{tpu_custom_call.1} parent=1 // pred_check
      _
    $region91: #{tpu_custom_call.1} parent=1 // pred_check_branch
      %189 = sbr.rel (0) target = $region93
    $region92: #{tpu_custom_call.1} parent=1 // pred_region
      %191 = dma.done [#allocation17], 4096
    $region93: #{tpu_custom_call.1} parent=1 // pred_fallthru
      _
    // Predicated region
    $region94: #{tpu_custom_call.1} parent=1 // pred_check
      _
    $region95: #{tpu_custom_call.1} parent=1 // pred_check_branch
      %193 = sbr.rel (0) target = $region97
    $region96: #{tpu_custom_call.1} parent=1 // pred_region
      %195 = dma.done [#allocation17], 256
    $region97: #{tpu_custom_call.1} parent=1 // pred_fallthru
      _
    %196 = sfence
    %v198 = vld [vmem:[#allocation18] sm:$0xff]
    %v199 = vld [vmem:[#allocation18 + $0x8] sm:$0xff]
    %v200 = vld [vmem:[#allocation2] sm:$0x3]
    %v201 = vld [vmem:[#allocation7] sm:$0xff]
    %v202 = vld [vmem:[#allocation7 + $0x8] sm:$0xff]
    %v203 = vld [vmem:[#allocation7 + $0x10] sm:$0xff]
    %v204 = vld [vmem:[#allocation7 + $0x18] sm:$0xff]
    %v205 = vperm.slane %v198, 5
    %vm206 = vcmask 261120
    %v208 = vsel %vm206, %v200, 0
    %210 = vmatpush.msra.mxu0 0.0
    %211 = vmatpush.msra.mxu0 0.0
    %212 = vmatpush.msra.mxu0 0.0
    %213 = vmatpush.msra.mxu0 0.0
    %214 = vmatpush.msra.mxu0 0.0
    %215 = vmatpush.msra.mxu0 0.0
    %216 = vmatpush.msra.mxu0 0.0
    %217 = vmatpush.msra.mxu0 0.0
    %218 = vmatpush.msra.mxu0 0.0
    %219 = vmatpush.msra.mxu0 0.0
    %220 = vmatpush.msra.mxu0 0.0
    %221 = vmatpush.msra.mxu0 0.0
    %222 = vmatpush.msra.mxu0 %v204
    %223 = vmatpush.msra.mxu0 %v203
    %224 = vmatpush.msra.mxu0 %v202
    %225 = vmatpush.msra.mxu0 %v201
    %226 = vmatmul.f32.gmra.mxu0 %v208
    %v227 = vpop.f32.mrf.mxu0
    %v228 = vadd.f32 %v205, %v227
    %229 = vdwg.mxu0
    %v230 = vld [vmem:[%s1] sm:$0xff]
    %v231 = vld [vmem:[%s1 + $0x8] sm:$0xff]
    %v232 = vld [vmem:[%s1 + $0x10] sm:$0xff]
    %v233 = vld [vmem:[%s1 + $0x18] sm:$0xff]
    %v234 = vld [vmem:[%s4] sm:$0xff]
    %v235 = vld [vmem:[%s4 + $0x8] sm:$0xff]
    %v236 = vperm.slane %v198, 0
    %v237 = vperm.slane %v199, 0
    %vm238 = vcmask 64512
    %v240 = vsel %vm238, %v230, 0
    %v243 = vsel %vm238, %v231, 0
    %v246 = vsel %vm238, %v232, 0
    %v249 = vsel %vm238, %v233, 0
    %251 = vmatpush.msra.mxu0 0.0
    %252 = vmatpush.msra.mxu0 0.0
    %253 = vmatpush.msra.mxu0 0.0
    %254 = vmatpush.msra.mxu0 0.0
    %255 = vmatpush.msra.mxu0 0.0
    %256 = vmatpush.msra.mxu0 0.0
    %257 = vmatpush.msra.mxu0 0.0
    %258 = vmatpush.msra.mxu0 0.0
    %259 = vmatpush.msra.mxu0 0.0
    %260 = vmatpush.msra.mxu0 0.0
    %261 = vmatpush.msra.mxu0 0.0
    %262 = vmatpush.msra.mxu0 0.0
    %263 = vmatpush.msra.mxu0 0.0
    %264 = vmatpush.msra.mxu0 0.0
    %265 = vmatpush.msra.mxu0 0.0
    %266 = vmatpush.msra.mxu0 %v234
    %267 = vmatmul.f32.gmra.mxu0 %v240
    %v268 = vpop.f32.mrf.mxu0
    %v269 = vadd.f32 %v236, %v268
    %270 = vmatmul.f32.gmra.mxu0 %v243
    %v271 = vpop.f32.mrf.mxu0
    %v272 = vadd.f32 %v236, %v271
    %273 = vmatmul.f32.gmra.mxu0 %v246
    %v274 = vpop.f32.mrf.mxu0
    %v275 = vadd.f32 %v236, %v274
    %276 = vmatmul.f32.gmra.mxu0 %v249
    %v277 = vpop.f32.mrf.mxu0
    %v278 = vadd.f32 %v236, %v277
    %279 = vdwg.mxu0
    %280 = vmatpush.msra.mxu0 0.0
    %281 = vmatpush.msra.mxu0 0.0
    %282 = vmatpush.msra.mxu0 0.0
    %283 = vmatpush.msra.mxu0 0.0
    %284 = vmatpush.msra.mxu0 0.0
    %285 = vmatpush.msra.mxu0 0.0
    %286 = vmatpush.msra.mxu0 0.0
    %287 = vmatpush.msra.mxu0 0.0
    %288 = vmatpush.msra.mxu0 0.0
    %289 = vmatpush.msra.mxu0 0.0
    %290 = vmatpush.msra.mxu0 0.0
    %291 = vmatpush.msra.mxu0 0.0
    %292 = vmatpush.msra.mxu0 0.0
    %293 = vmatpush.msra.mxu0 0.0
    %294 = vmatpush.msra.mxu0 0.0
    %295 = vmatpush.msra.mxu0 %v235
    %296 = vmatmul.f32.gmra.mxu0 %v240
    %v297 = vpop.f32.mrf.mxu0
    %v298 = vadd.f32 %v237, %v297
    %299 = vmatmul.f32.gmra.mxu0 %v243
    %v300 = vpop.f32.mrf.mxu0
    %v301 = vadd.f32 %v237, %v300
    %302 = vmatmul.f32.gmra.mxu0 %v246
    %v303 = vpop.f32.mrf.mxu0
    %v304 = vadd.f32 %v237, %v303
    %305 = vmatmul.f32.gmra.mxu0 %v249
    %v306 = vpop.f32.mrf.mxu0
    %v307 = vadd.f32 %v237, %v306
    %308 = vdwg.mxu0
    %v309 = vmax.f32 %v269, 0.0
    %v310 = vmax.f32 %v298, 0.0
    %v311 = vmax.f32 %v272, 0.0
    %v312 = vmax.f32 %v301, 0.0
    %v313 = vmax.f32 %v275, 0.0
    %v314 = vmax.f32 %v304, 0.0
    %v315 = vmax.f32 %v278, 0.0
    %v316 = vmax.f32 %v307, 0.0
    %v317 = vadd.f32 %v309, %v311
    %v318 = vrot.slane %v317, 4
    %v319 = vadd.f32 %v317, %v318
    %v320 = vrot.slane %v319, 2
    %v321 = vadd.f32 %v319, %v320
    %v322 = vrot.slane %v321, 1
    %v323 = vadd.f32 %v321, %v322
    %vm324 = vcmask 523264
    %v325 = vsel %vm324, %v310, 0.0
    %v326 = vsel %vm324, %v312, 0.0
    %v327 = vadd.f32 %v325, %v326
    %v328 = vrot.slane %v327, 4
    %v329 = vadd.f32 %v327, %v328
    %v330 = vrot.slane %v329, 2
    %v331 = vadd.f32 %v329, %v330
    %v332 = vrot.slane %v331, 1
    %v333 = vadd.f32 %v331, %v332
    %v334 = vadd.f32 %v313, %v315
    %v335 = vrot.slane %v334, 4
    %v336 = vadd.f32 %v334, %v335
    %v337 = vrot.slane %v336, 2
    %v338 = vadd.f32 %v336, %v337
    %v339 = vrot.slane %v338, 1
    %v340 = vadd.f32 %v338, %v339
    %v341 = vsel %vm324, %v314, 0.0
    %v342 = vsel %vm324, %v316, 0.0
    %v343 = vadd.f32 %v341, %v342
    %v344 = vrot.slane %v343, 4
    %v345 = vadd.f32 %v343, %v344
    %v346 = vrot.slane %v345, 2
    %v347 = vadd.f32 %v345, %v346
    %v348 = vrot.slane %v347, 1
    %v349 = vadd.f32 %v347, %v348
    %v350 = vrcp.pop 16.0
    %v351 = vmul.f32 16.0, %v350
    %v352 = vsub.f32 1.0, %v351
    %v353 = vmul.f32 %v350, %v352
    %v354 = vadd.f32 %v350, %v353
    %vm355 = vweird.f32 %v350
    %v356 = vsel %vm355, %v350, %v354
    %v357 = vmul.f32 %v323, %v356
    %v358 = vmul.f32 %v333, %v356
    %v359 = vmul.f32 %v340, %v356
    %v360 = vmul.f32 %v349, %v356
    %v361 = vld [vmem:[%s5] sm:$0xff]
    %v362 = vld [vmem:[%s5 + $0x8] sm:$0xff]
    %v363 = vld [vmem:[%s5 + $0x10] sm:$0xff]
    %v364 = vld [vmem:[%s5 + $0x18] sm:$0xff]
    %v365 = vld [vmem:[%s5 + $0x20] sm:$0xff]
    %v366 = vld [vmem:[%s5 + $0x28] sm:$0xff]
    %v367 = vld [vmem:[%s5 + $0x30] sm:$0xff]
    %v368 = vld [vmem:[%s5 + $0x38] sm:$0xff]
    %v369 = vld [vmem:[%s5 + $0x40] sm:$0xff]
    %v370 = vld [vmem:[%s5 + $0x48] sm:$0xff]
    %v371 = vld [vmem:[%s5 + $0x50] sm:$0xff]
    %v372 = vld [vmem:[%s5 + $0x58] sm:$0xff]
    %v373 = vld [vmem:[%s5 + $0x60] sm:$0xff]
    %v374 = vld [vmem:[%s5 + $0x68] sm:$0xff]
    %v375 = vld [vmem:[%s5 + $0x70] sm:$0xff]
    %v376 = vld [vmem:[%s5 + $0x78] sm:$0xff]
    %v377 = vld [vmem:[%s5 + $0x80] sm:$0xff]
    %v378 = vld [vmem:[%s5 + $0x88] sm:$0xff]
    %v379 = vld [vmem:[%s5 + $0x90] sm:$0xff]
    %v380 = vld [vmem:[%s5 + $0x98] sm:$0xff]
    %v381 = vld [vmem:[%s5 + $0xa0] sm:$0xff]
    %v382 = vld [vmem:[%s5 + $0xa8] sm:$0xff]
    %v383 = vld [vmem:[%s5 + $0xb0] sm:$0xff]
    %v384 = vld [vmem:[%s5 + $0xb8] sm:$0xff]
    %vm389 = vcmask 1041409
    %v390 = vsel %vm389, %v359, %v357
    %v391 = vsel %vm389, %v360, %v358
    %v393 = vsel %vm324, %v391, 0
    %395 = vmatpush.msra.mxu0 %v376
    %396 = vmatpush.msra.mxu0 %v375
    %397 = vmatpush.msra.mxu0 %v374
    %398 = vmatpush.msra.mxu0 %v373
    %399 = vmatpush.msra.mxu0 %v372
    %400 = vmatpush.msra.mxu0 %v371
    %401 = vmatpush.msra.mxu0 %v370
    %402 = vmatpush.msra.mxu0 %v369
    %403 = vmatpush.msra.mxu0 %v368
    %404 = vmatpush.msra.mxu0 %v367
    %405 = vmatpush.msra.mxu0 %v366
    %406 = vmatpush.msra.mxu0 %v365
    %407 = vmatpush.msra.mxu0 %v364
    %408 = vmatpush.msra.mxu0 %v363
    %409 = vmatpush.msra.mxu0 %v362
    %410 = vmatpush.msra.mxu0 %v361
    %411 = vmatmul.f32.gmra.mxu0 %v390
    %v412 = vpop.f32.mrf.mxu0
    %v413 = vadd.f32 0.0, %v412
    %414 = vdwg.mxu0
    %415 = vmatpush.msra.mxu0 0.0
    %416 = vmatpush.msra.mxu0 0.0
    %417 = vmatpush.msra.mxu0 0.0
    %418 = vmatpush.msra.mxu0 0.0
    %419 = vmatpush.msra.mxu0 0.0
    %420 = vmatpush.msra.mxu0 0.0
    %421 = vmatpush.msra.mxu0 0.0
    %422 = vmatpush.msra.mxu0 0.0
    %423 = vmatpush.msra.mxu0 %v384
    %424 = vmatpush.msra.mxu0 %v383
    %425 = vmatpush.msra.mxu0 %v382
    %426 = vmatpush.msra.mxu0 %v381
    %427 = vmatpush.msra.mxu0 %v380
    %428 = vmatpush.msra.mxu0 %v379
    %429 = vmatpush.msra.mxu0 %v378
    %430 = vmatpush.msra.mxu0 %v377
    %431 = vmatmul.f32.gmra.mxu0 %v393
    %v432 = vpop.f32.mrf.mxu0
    %v433 = vadd.f32 %v413, %v432
    %434 = vdwg.mxu0
    %v435 = vmax.f32 %v433, 0.0
    %v436 = vld [vmem:[#allocation9] sm:$0xff]
    %v437 = vld [vmem:[#allocation9 + $0x8] sm:$0xff]
    %v438 = vld [vmem:[#allocation9 + $0x10] sm:$0xf]
    %v439 = vld [vmem:[#allocation9 + $0x18] sm:$0xf]
    %vm440 = vcmask 97280
    %v442 = vsel %vm440, %v435, 0
    %vm444 = vcmask 1043456
    %v446 = vsel %vm444, %v438, 0
    %v449 = vsel %vm444, %v439, 0
    %451 = vmatpush.msra.mxu0 0.0
    %452 = vmatpush.msra.mxu0 0.0
    %453 = vmatpush.msra.mxu0 0.0
    %454 = vmatpush.msra.mxu0 0.0
    %455 = vmatpush.msra.mxu0 0.0
    %456 = vmatpush.msra.mxu0 0.0
    %457 = vmatpush.msra.mxu0 0.0
    %458 = vmatpush.msra.mxu0 0.0
    %459 = vmatpush.msra.mxu0 0.0
    %460 = vmatpush.msra.mxu0 0.0
    %461 = vmatpush.msra.mxu0 0.0
    %462 = vmatpush.msra.mxu0 0.0
    %463 = vmatpush.msra.mxu0 0.0
    %464 = vmatpush.msra.mxu0 0.0
    %465 = vmatpush.msra.mxu0 %v446
    %466 = vmatpush.msra.mxu0 %v436
    %467 = vmatmul.f32.gmra.mxu0 %v442
    %v468 = vpop.f32.mrf.mxu0
    %v469 = vadd.f32 0.0, %v468
    %470 = vdwg.mxu0
    %471 = vmatpush.msra.mxu0 0.0
    %472 = vmatpush.msra.mxu0 0.0
    %473 = vmatpush.msra.mxu0 0.0
    %474 = vmatpush.msra.mxu0 0.0
    %475 = vmatpush.msra.mxu0 0.0
    %476 = vmatpush.msra.mxu0 0.0
    %477 = vmatpush.msra.mxu0 0.0
    %478 = vmatpush.msra.mxu0 0.0
    %479 = vmatpush.msra.mxu0 0.0
    %480 = vmatpush.msra.mxu0 0.0
    %481 = vmatpush.msra.mxu0 0.0
    %482 = vmatpush.msra.mxu0 0.0
    %483 = vmatpush.msra.mxu0 0.0
    %484 = vmatpush.msra.mxu0 0.0
    %485 = vmatpush.msra.mxu0 %v449
    %486 = vmatpush.msra.mxu0 %v437
    %487 = vmatmul.f32.gmra.mxu0 %v442
    %v488 = vpop.f32.mrf.mxu0
    %v489 = vadd.f32 0.0, %v488
    %490 = vdwg.mxu0
    %v491 = vxor.u32 %v469, 2147483648
    %v492 = vxor.u32 %v489, 2147483648
    %v493 = vmul.f32 %v491, 1.442695
    %v494 = vpow.pop %v493
    %v495 = vmul.f32 %v492, 1.442695
    %v496 = vpow.pop %v495
    %v497 = vadd.f32 %v494, 1.0
    %v498 = vadd.f32 %v496, 1.0
    %v499 = vrcp.pop %v497
    %v500 = vmul.f32 %v497, %v499
    %v501 = vsub.f32 1.0, %v500
    %v502 = vmul.f32 %v499, %v501
    %v503 = vadd.f32 %v499, %v502
    %vm504 = vweird.f32 %v497
    %vm505 = vweird.f32 %v499
    %vm506 = vmor %vm504, %vm505
    %v507 = vsel %vm506, %v499, %v503
    %v508 = vand.u32 2147483647, %v497
    %vm509 = vcmp.eq.f32.partialorder %v508, 8.507059e+37
    %v510 = vand.u32 %v497, 2147483648
    %v511 = vor.u32 1.1754944e-38, %v510
    %v512 = vsel %vm509, %v511, %v507
    %v513 = vmul.f32 1.0, %v512
    %v514 = vrcp.pop %v498
    %v515 = vmul.f32 %v498, %v514
    %v516 = vsub.f32 1.0, %v515
    %v517 = vmul.f32 %v514, %v516
    %v518 = vadd.f32 %v514, %v517
    %vm519 = vweird.f32 %v498
    %vm520 = vweird.f32 %v514
    %vm521 = vmor %vm519, %vm520
    %v522 = vsel %vm521, %v514, %v518
    %v523 = vand.u32 2147483647, %v498
    %vm524 = vcmp.eq.f32.partialorder %v523, 8.507059e+37
    %v525 = vand.u32 %v498, 2147483648
    %v526 = vor.u32 1.1754944e-38, %v525
    %v527 = vsel %vm524, %v526, %v522
    %v528 = vmul.f32 1.0, %v527
    %v531 = vrot.slane %v528, 7
    %vm532 = vcmask 1040384
    %v533 = vsel %vm532, %v513, %v531
    %v534 = vsel %vm389, %v513, %v531
    %v535 = vrot.slane %v534, 1
    %v536 = vperm.slane %v533, 0
    %v537 = vperm.slane %v533, 1
    %v538 = vperm.slane %v535, 0
    %v539 = vperm.slane %v535, 1
    %v544 = vmul.f32 %v309, %v536
    %v545 = vmul.f32 %v310, %v537
    %v546 = vmul.f32 %v311, %v536
    %v547 = vmul.f32 %v312, %v537
    %v548 = vmul.f32 %v313, %v538
    %v549 = vmul.f32 %v314, %v539
    %v550 = vmul.f32 %v315, %v538
    %v551 = vmul.f32 %v316, %v539
    %v552 = vsel %vm324, %v545, 0.0
    %v553 = vadd.f32 %v544, %v552
    %554 = vadd.xlane.f32.xlu0 %v553
    %v555 = vpop.xlane.xlu0 %554
    %v556 = vsel %vm324, %v547, 0.0
    %v557 = vadd.f32 %v546, %v556
    %558 = vadd.xlane.f32.xlu0 %v557
    %v559 = vpop.xlane.xlu0 %558
    %v560 = vsel %vm324, %v549, 0.0
    %v561 = vadd.f32 %v548, %v560
    %562 = vadd.xlane.f32.xlu0 %v561
    %v563 = vpop.xlane.xlu0 %562
    %v564 = vsel %vm324, %v551, 0.0
    %v565 = vadd.f32 %v550, %v564
    %566 = vadd.xlane.f32.xlu0 %v565
    %v567 = vpop.xlane.xlu0 %566
    %v568 = vrcp.pop 192.0
    %v569 = vmul.f32 192.0, %v568
    %v570 = vsub.f32 1.0, %v569
    %v571 = vmul.f32 %v568, %v570
    %v572 = vadd.f32 %v568, %v571
    %vm573 = vweird.f32 %v568
    %v574 = vsel %vm573, %v568, %v572
    %v575 = vmul.f32 %v555, %v574
    %v576 = vmul.f32 %v559, %v574
    %v577 = vmul.f32 %v563, %v574
    %v578 = vmul.f32 %v567, %v574
    %v579 = vsel %vm324, %v545, -inf
    %v580 = vmax.f32 %v544, %v579
    %581 = vmax.xlane.f32.xlu0 %v580
    %v582 = vpop.xlane.xlu0 %581
    %v583 = vsel %vm324, %v547, -inf
    %v584 = vmax.f32 %v546, %v583
    %585 = vmax.xlane.f32.xlu0 %v584
    %v586 = vpop.xlane.xlu0 %585
    %v587 = vsel %vm324, %v549, -inf
    %v588 = vmax.f32 %v548, %v587
    %589 = vmax.xlane.f32.xlu0 %v588
    %v590 = vpop.xlane.xlu0 %589
    %v591 = vsel %vm324, %v551, -inf
    %v592 = vmax.f32 %v550, %v591
    %593 = vmax.xlane.f32.xlu0 %v592
    %v594 = vpop.xlane.xlu0 %593
    %v599 = vlaneseq
    %v600 = vand.u32 %v599, 127
    %v601 = vadd.s32 %v600, 4294967293
    %v602 = vperm.slane %v575, %v601
    %v603 = vadd.s32 %v600, 4294967285
    %v604 = vperm.slane %v576, %v603
    %vm605 = vcmask 154712
    %v606 = vsel %vm605, %v604, %v602
    %v607 = vperm.slane %v577, %v601
    %v608 = vperm.slane %v578, %v603
    %v609 = vsel %vm605, %v608, %v607
    %v610 = vsel %vm389, %v609, %v606
    %vm612 = vcmask 23552
    %v613 = vsel %vm612, 0.0, %v610
    %vm614 = vcmask 154624
    %v615 = vsel %vm614, %v613, 0.0
    %v620 = vperm.slane %v582, %v601
    %v621 = vperm.slane %v586, %v603
    %v622 = vsel %vm605, %v621, %v620
    %v623 = vperm.slane %v590, %v601
    %v624 = vperm.slane %v594, %v603
    %v625 = vsel %vm605, %v624, %v623
    %v626 = vsel %vm389, %v625, %v622
    %v628 = vsel %vm612, 0.0, %v626
    %v629 = vsel %vm614, %v628, 0.0
    %s630 = sld [smem:[#allocation6]]
    %v631 = vstv %s630
    %v632 = vmul.f32 %v615, %v631
    %v633 = vadd.f32 %v632, 0.0
    %s634 = sld [smem:[#allocation6 + $0x7]]
    %v635 = vstv %s634
    %v636 = vmul.f32 %v629, %v635
    %v637 = vadd.f32 %v633, %v636
    %s638 = sld [smem:[#allocation6 + $0x1]]
    %v639 = vstv %s638
    %v640 = vmul.f32 %v615, %v639
    %642 = vrot.lane.b32.xlu0 %v640, 127
    %v643 = vpop.permute.xlu0 %642
    %v645 = vadd.f32 %v637, %v643
    %s646 = sld [smem:[#allocation6 + $0x8]]
    %v647 = vstv %s646
    %v648 = vmul.f32 %v629, %v647
    %650 = vrot.lane.b32.xlu0 %v648, 127
    %v651 = vpop.permute.xlu0 %650
    %v653 = vadd.f32 %v645, %v651
    %s654 = sld [smem:[#allocation6 + $0x2]]
    %v655 = vstv %s654
    %v656 = vmul.f32 %v615, %v655
    %658 = vrot.lane.b32.xlu0 %v656, 126
    %v659 = vpop.permute.xlu0 %658
    %v661 = vadd.f32 %v653, %v659
    %s662 = sld [smem:[#allocation6 + $0x9]]
    %v663 = vstv %s662
    %v664 = vmul.f32 %v629, %v663
    %666 = vrot.lane.b32.xlu0 %v664, 126
    %v667 = vpop.permute.xlu0 %666
    %v669 = vadd.f32 %v661, %v667
    %s670 = sld [smem:[#allocation6 + $0x3]]
    %v671 = vstv %s670
    %v672 = vmul.f32 %v615, %v671
    %674 = vrot.lane.b32.xlu0 %v672, 125
    %v675 = vpop.permute.xlu0 %674
    %v677 = vadd.f32 %v669, %v675
    %s678 = sld [smem:[#allocation6 + $0xa]]
    %v679 = vstv %s678
    %v680 = vmul.f32 %v629, %v679
    %682 = vrot.lane.b32.xlu0 %v680, 125
    %v683 = vpop.permute.xlu0 %682
    %v685 = vadd.f32 %v677, %v683
    %s686 = sld [smem:[#allocation6 + $0x4]]
    %v687 = vstv %s686
    %v688 = vmul.f32 %v615, %v687
    %690 = vrot.lane.b32.xlu0 %v688, 124
    %v691 = vpop.permute.xlu0 %690
    %v693 = vadd.f32 %v685, %v691
    %s694 = sld [smem:[#allocation6 + $0xb]]
    %v695 = vstv %s694
    %v696 = vmul.f32 %v629, %v695
    %698 = vrot.lane.b32.xlu0 %v696, 124
    %v699 = vpop.permute.xlu0 %698
    %v701 = vadd.f32 %v693, %v699
    %s702 = sld [smem:[#allocation6 + $0x5]]
    %v703 = vstv %s702
    %v704 = vmul.f32 %v615, %v703
    %706 = vrot.lane.b32.xlu0 %v704, 123
    %v707 = vpop.permute.xlu0 %706
    %v709 = vadd.f32 %v701, %v707
    %s710 = sld [smem:[#allocation6 + $0xc]]
    %v711 = vstv %s710
    %v712 = vmul.f32 %v629, %v711
    %714 = vrot.lane.b32.xlu0 %v712, 123
    %v715 = vpop.permute.xlu0 %714
    %v717 = vadd.f32 %v709, %v715
    %s718 = sld [smem:[#allocation6 + $0x6]]
    %v719 = vstv %s718
    %v720 = vmul.f32 %v615, %v719
    %722 = vrot.lane.b32.xlu0 %v720, 122
    %v723 = vpop.permute.xlu0 %722
    %v725 = vadd.f32 %v717, %v723
    %s726 = sld [smem:[#allocation6 + $0xd]]
    %v727 = vstv %s726
    %v728 = vmul.f32 %v629, %v727
    %730 = vrot.lane.b32.xlu0 %v728, 122
    %v731 = vpop.permute.xlu0 %730
    %v733 = vadd.f32 %v725, %v731
    %v734 = vxor.u32 %v733, 2147483648
    %v735 = vmul.f32 %v734, 1.442695
    %v736 = vpow.pop %v735
    %v737 = vadd.f32 %v736, 1.0
    %v738 = vrcp.pop %v737
    %v739 = vmul.f32 %v737, %v738
    %v740 = vsub.f32 1.0, %v739
    %v741 = vmul.f32 %v738, %v740
    %v742 = vadd.f32 %v738, %v741
    %vm743 = vweird.f32 %v737
    %vm744 = vweird.f32 %v738
    %vm745 = vmor %vm743, %vm744
    %v746 = vsel %vm745, %v738, %v742
    %v747 = vand.u32 2147483647, %v737
    %vm748 = vcmp.eq.f32.partialorder %v747, 8.507059e+37
    %v749 = vand.u32 %v737, 2147483648
    %v750 = vor.u32 1.1754944e-38, %v749
    %v751 = vsel %vm748, %v750, %v746
    %v752 = vmul.f32 1.0, %v751
    %v753 = vperm.slane %v752, 0
    %v754 = vlaneseq
    %v755 = vshrl.u32 %v754, 7
    %757 = vset.pattern.permute.xlu0 %v755
    %758 = vperm.xlu0 %757, %v753
    %v759 = vpop.permute.xlu0 %758
    %v760 = vlaneseq
    %v761 = vshrl.u32 %v760, 7
    %v762 = vadd.s32 %v761, 8
    %763 = vset.pattern.permute.xlu0 %v762
    %764 = vperm.xlu0 %763, %v753
    %v765 = vpop.permute.xlu0 %764
    %v766 = vperm.slane %v752, 1
    %v767 = vlaneseq
    %v768 = vshrl.u32 %v767, 7
    %770 = vset.pattern.permute.xlu0 %v768
    %771 = vperm.xlu0 %770, %v766
    %v772 = vpop.permute.xlu0 %771
    %v773 = vlaneseq
    %v774 = vshrl.u32 %v773, 7
    %v775 = vadd.s32 %v774, 8
    %776 = vset.pattern.permute.xlu0 %v775
    %777 = vperm.xlu0 %776, %v766
    %v778 = vpop.permute.xlu0 %777
    %v779 = vmul.f32 %v544, %v759
    %v780 = vmul.f32 %v545, %v759
    %v781 = vmul.f32 %v546, %v765
    %v782 = vmul.f32 %v547, %v765
    %v783 = vmul.f32 %v548, %v772
    %v784 = vmul.f32 %v549, %v772
    %v785 = vmul.f32 %v550, %v778
    %v786 = vmul.f32 %v551, %v778
    %v787 = vlaneseq
    %v788 = vshrl.u32 %v787, 7
    %v789 = vadd.s32 %v788, 8
    %v790 = vadd.s32 %v788, 16
    %v791 = vadd.s32 %v788, 24
    %vm792 = vcmp.lt.s32.totalorder %v788, 0
    %v793 = vsub.s32 0, %v788
    %v794 = vsel %vm792, %v793, %v788
    %v795 = vshrl.u32 %v794, 4
    %v796 = vand.u32 %v794, 15
    %v797 = vsub.s32 0, %v796
    %v798 = vsel %vm792, %v797, %v796
    %vm799 = vcmp.lt.s32.totalorder %v789, 0
    %v800 = vsub.s32 0, %v789
    %v801 = vsel %vm799, %v800, %v789
    %v802 = vshrl.u32 %v801, 4
    %v803 = vand.u32 %v801, 15
    %v804 = vsub.s32 0, %v803
    %v805 = vsel %vm799, %v804, %v803
    %vm806 = vcmp.lt.s32.totalorder %v790, 0
    %v807 = vsub.s32 0, %v790
    %v808 = vsel %vm806, %v807, %v790
    %v809 = vshrl.u32 %v808, 4
    %v810 = vand.u32 %v808, 15
    %v811 = vsub.s32 0, %v810
    %v812 = vsel %vm806, %v811, %v810
    %vm813 = vcmp.lt.s32.totalorder %v791, 0
    %v814 = vsub.s32 0, %v791
    %v815 = vsel %vm813, %v814, %v791
    %v816 = vshrl.u32 %v815, 4
    %v817 = vand.u32 %v815, 15
    %v818 = vsub.s32 0, %v817
    %v819 = vsel %vm813, %v818, %v817
    %vm820 = vcmp.ne.s32.totalorder %v798, 0
    %vm821 = vcmp.ne.s32.totalorder %v805, 0
    %vm822 = vcmp.ne.s32.totalorder %v812, 0
    %vm823 = vcmp.ne.s32.totalorder %v819, 0
    %vm824 = vcmp.lt.s32.totalorder %v798, 0
    %vm825 = vcmp.lt.s32.totalorder %v805, 0
    %vm826 = vcmp.lt.s32.totalorder %v812, 0
    %vm827 = vcmp.lt.s32.totalorder %v819, 0
    %vm828 = vmand %vm824, %vm820
    %vm829 = vmand %vm825, %vm821
    %vm830 = vmand %vm826, %vm822
    %vm831 = vmand %vm827, %vm823
    %v832 = vadd.s32 %v798, 16
    %v833 = vadd.s32 %v805, 16
    %v834 = vadd.s32 %v812, 16
    %v835 = vadd.s32 %v819, 16
    %v836 = vsel %vm828, %v832, %v798
    %v837 = vsel %vm829, %v833, %v805
    %v838 = vsel %vm830, %v834, %v812
    %v839 = vsel %vm831, %v835, %v819
    %vm840 = vcmp.ne.s32.totalorder %v836, 0
    %vm841 = vcmp.ne.s32.totalorder %v837, 0
    %vm842 = vcmp.ne.s32.totalorder %v838, 0
    %vm843 = vcmp.ne.s32.totalorder %v839, 0
    %vm844 = vcmp.ne.s32.totalorder %v836, 15
    %vm845 = vcmp.ne.s32.totalorder %v837, 15
    %vm846 = vcmp.ne.s32.totalorder %v838, 15
    %vm847 = vcmp.ne.s32.totalorder %v839, 15
    %v848 = vpack.c.bf16 %v781, %v779
    %v849 = vpack.c.bf16 %v782, %v780
    %v850 = vpack.c.bf16 %v785, %v783
    %v851 = vpack.c.bf16 %v786, %v784
    %v852 = vld [vmem:[#allocation10] sm:$0xf]
    %v853 = vld [vmem:[#allocation10 + $0x4] sm:$0xf]
    %v854 = vld [vmem:[#allocation10 + $0x8] sm:$0xf]
    %v855 = vld [vmem:[#allocation10 + $0xc] sm:$0xf]
    %v856 = vld [vmem:[#allocation10 + $0x10] sm:$0xf]
    %v857 = vld [vmem:[#allocation10 + $0x14] sm:$0xf]
    %v858 = vld [vmem:[#allocation10 + $0x18] sm:$0xf]
    %v859 = vld [vmem:[#allocation10 + $0x1c] sm:$0xf]
    %v860 = vld [vmem:[#allocation10 + $0x20] sm:$0xf]
    %v861 = vld [vmem:[#allocation10 + $0x24] sm:$0xf]
    %v862 = vld [vmem:[#allocation10 + $0x28] sm:$0xf]
    %v863 = vld [vmem:[#allocation10 + $0x2c] sm:$0xf]
    %v864 = vld [vmem:[#allocation10 + $0x30] sm:$0xf]
    %v865 = vld [vmem:[#allocation10 + $0x34] sm:$0xf]
    %v866 = vld [vmem:[#allocation10 + $0x38] sm:$0xf]
    %v867 = vld [vmem:[#allocation10 + $0x3c] sm:$0xf]
    %v868 = vld [vmem:[#allocation10 + $0x40] sm:$0xf]
    %v869 = vld [vmem:[#allocation10 + $0x44] sm:$0xf]
    %v870 = vld [vmem:[#allocation10 + $0x48] sm:$0xf]
    %v871 = vld [vmem:[#allocation10 + $0x4c] sm:$0xf]
    %v872 = vld [vmem:[#allocation10 + $0x50] sm:$0xf]
    %v873 = vld [vmem:[#allocation10 + $0x54] sm:$0xf]
    %v874 = vld [vmem:[#allocation10 + $0x58] sm:$0xf]
    %v875 = vld [vmem:[#allocation10 + $0x5c] sm:$0xf]
    %v900 = vunpack.c.l.b16 %v852
    %v901 = vunpack.c.l.b16 %v853
    %v902 = vunpack.c.l.b16 %v854
    %v903 = vunpack.c.l.b16 %v855
    %v904 = vunpack.c.l.b16 %v856
    %v905 = vunpack.c.l.b16 %v857
    %v906 = vunpack.c.l.b16 %v858
    %v907 = vunpack.c.l.b16 %v859
    %v908 = vunpack.c.l.b16 %v860
    %v909 = vunpack.c.l.b16 %v861
    %v910 = vunpack.c.l.b16 %v862
    %v911 = vunpack.c.l.b16 %v863
    %v912 = vunpack.c.l.b16 %v864
    %v913 = vunpack.c.l.b16 %v865
    %v914 = vunpack.c.l.b16 %v866
    %v915 = vunpack.c.l.b16 %v867
    %v916 = vunpack.c.l.b16 %v868
    %v917 = vunpack.c.l.b16 %v869
    %v918 = vunpack.c.l.b16 %v870
    %v919 = vunpack.c.l.b16 %v871
    %v920 = vunpack.c.l.b16 %v872
    %v921 = vunpack.c.l.b16 %v873
    %v922 = vunpack.c.l.b16 %v874
    %v923 = vunpack.c.l.b16 %v875
    %v924 = vpack.c.b16 %v901, %v900
    %v925 = vpack.c.b16 %v903, %v902
    %v926 = vpack.c.b16 %v905, %v904
    %v927 = vpack.c.b16 %v907, %v906
    %v928 = vpack.c.b16 %v909, %v908
    %v929 = vpack.c.b16 %v911, %v910
    %v930 = vpack.c.b16 %v913, %v912
    %v931 = vpack.c.b16 %v915, %v914
    %v932 = vpack.c.b16 %v917, %v916
    %v933 = vpack.c.b16 %v919, %v918
    %v934 = vpack.c.b16 %v921, %v920
    %v935 = vpack.c.b16 %v923, %v922
    %v949 = vsel %vm324, %v849, 0
    %v952 = vsel %vm324, %v851, 0
    %954 = vmatpush.bf16.msra.mxu0 %v931
    %955 = vmatpush.bf16.msra.mxu0 %v930
    %956 = vmatpush.bf16.msra.mxu0 %v929
    %957 = vmatpush.bf16.msra.mxu0 %v928
    %958 = vmatpush.bf16.msra.mxu0 %v927
    %959 = vmatpush.bf16.msra.mxu0 %v926
    %960 = vmatpush.bf16.msra.mxu0 %v925
    %961 = vmatpush.bf16.msra.mxu0 %v924
    %962 = vmatmul.bf16.gmra.mxu0 %v848
    %v963 = vpop.f32.mrf.mxu0
    %v964 = vadd.f32 0.0, %v963
    %v965 = vpop.f32.mrf.mxu0
    %v966 = vadd.f32 0.0, %v965
    %967 = vmatmul.bf16.gmra.mxu0 %v850
    %v968 = vpop.f32.mrf.mxu0
    %v969 = vadd.f32 0.0, %v968
    %v970 = vpop.f32.mrf.mxu0
    %v971 = vadd.f32 0.0, %v970
    %972 = vdwg.mxu0
    %973 = vmatpush.bf16.msra.mxu0 0
    %974 = vmatpush.bf16.msra.mxu0 0
    %975 = vmatpush.bf16.msra.mxu0 0
    %976 = vmatpush.bf16.msra.mxu0 0
    %977 = vmatpush.bf16.msra.mxu0 %v935
    %978 = vmatpush.bf16.msra.mxu0 %v934
    %979 = vmatpush.bf16.msra.mxu0 %v933
    %980 = vmatpush.bf16.msra.mxu0 %v932
    %981 = vmatmul.bf16.gmra.mxu0 %v949
    %v982 = vpop.f32.mrf.mxu0
    %v983 = vadd.f32 %v964, %v982
    %v984 = vpop.f32.mrf.mxu0
    %v985 = vadd.f32 %v966, %v984
    %986 = vmatmul.bf16.gmra.mxu0 %v952
    %v987 = vpop.f32.mrf.mxu0
    %v988 = vadd.f32 %v969, %v987
    %v989 = vpop.f32.mrf.mxu0
    %v990 = vadd.f32 %v971, %v989
    %991 = vdwg.mxu0
    %s992 = scalar_lea.vmem [#allocation10], 96
    %v993 = vld [vmem:[%s992] sm:$0xf]
    %v994 = vld [vmem:[%s992 + $0x4] sm:$0xf]
    %v995 = vld [vmem:[%s992 + $0x8] sm:$0xf]
    %v996 = vld [vmem:[%s992 + $0xc] sm:$0xf]
    %v997 = vld [vmem:[%s992 + $0x10] sm:$0xf]
    %v998 = vld [vmem:[%s992 + $0x14] sm:$0xf]
    %v999 = vld [vmem:[%s992 + $0x18] sm:$0xf]
    %v1000 = vld [vmem:[%s992 + $0x1c] sm:$0xf]
    %v1001 = vld [vmem:[%s992 + $0x20] sm:$0xf]
    %v1002 = vld [vmem:[%s992 + $0x24] sm:$0xf]
    %v1003 = vld [vmem:[%s992 + $0x28] sm:$0xf]
    %v1004 = vld [vmem:[%s992 + $0x2c] sm:$0xf]
    %v1005 = vld [vmem:[%s992 + $0x30] sm:$0xf]
    %v1006 = vld [vmem:[%s992 + $0x34] sm:$0xf]
    %v1007 = vld [vmem:[%s992 + $0x38] sm:$0xf]
    %v1008 = vld [vmem:[%s992 + $0x3c] sm:$0xf]
    %v1009 = vld [vmem:[%s992 + $0x40] sm:$0xf]
    %v1010 = vld [vmem:[%s992 + $0x44] sm:$0xf]
    %v1011 = vld [vmem:[%s992 + $0x48] sm:$0xf]
    %v1012 = vld [vmem:[%s992 + $0x4c] sm:$0xf]
    %v1013 = vld [vmem:[%s992 + $0x50] sm:$0xf]
    %v1014 = vld [vmem:[%s992 + $0x54] sm:$0xf]
    %v1015 = vld [vmem:[%s992 + $0x58] sm:$0xf]
    %v1016 = vld [vmem:[%s992 + $0x5c] sm:$0xf]
    %s1017 = scalar_lea.vmem [#allocation10], 192
    %v1018 = vld [vmem:[%s1017] sm:$0xf]
    %v1019 = vld [vmem:[%s1017 + $0x4] sm:$0xf]
    %v1020 = vld [vmem:[%s1017 + $0x8] sm:$0xf]
    %v1021 = vld [vmem:[%s1017 + $0xc] sm:$0xf]
    %v1022 = vld [vmem:[%s1017 + $0x10] sm:$0xf]
    %v1023 = vld [vmem:[%s1017 + $0x14] sm:$0xf]
    %v1024 = vld [vmem:[%s1017 + $0x18] sm:$0xf]
    %v1025 = vld [vmem:[%s1017 + $0x1c] sm:$0xf]
    %v1026 = vld [vmem:[%s1017 + $0x20] sm:$0xf]
    %v1027 = vld [vmem:[%s1017 + $0x24] sm:$0xf]
    %v1028 = vld [vmem:[%s1017 + $0x28] sm:$0xf]
    %v1029 = vld [vmem:[%s1017 + $0x2c] sm:$0xf]
    %v1030 = vld [vmem:[%s1017 + $0x30] sm:$0xf]
    %v1031 = vld [vmem:[%s1017 + $0x34] sm:$0xf]
    %v1032 = vld [vmem:[%s1017 + $0x38] sm:$0xf]
    %v1033 = vld [vmem:[%s1017 + $0x3c] sm:$0xf]
    %v1034 = vld [vmem:[%s1017 + $0x40] sm:$0xf]
    %v1035 = vld [vmem:[%s1017 + $0x44] sm:$0xf]
    %v1036 = vld [vmem:[%s1017 + $0x48] sm:$0xf]
    %v1037 = vld [vmem:[%s1017 + $0x4c] sm:$0xf]
    %v1038 = vld [vmem:[%s1017 + $0x50] sm:$0xf]
    %v1039 = vld [vmem:[%s1017 + $0x54] sm:$0xf]
    %v1040 = vld [vmem:[%s1017 + $0x58] sm:$0xf]
    %v1041 = vld [vmem:[%s1017 + $0x5c] sm:$0xf]
    %v1066 = vunpack.c.l.b16 %v1018
    %v1067 = vunpack.c.l.b16 %v1019
    %v1068 = vunpack.c.l.b16 %v1020
    %v1069 = vunpack.c.l.b16 %v1021
    %v1070 = vunpack.c.l.b16 %v1022
    %v1071 = vunpack.c.l.b16 %v1023
    %v1072 = vunpack.c.l.b16 %v1024
    %v1073 = vunpack.c.l.b16 %v1025
    %v1074 = vunpack.c.l.b16 %v1026
    %v1075 = vunpack.c.l.b16 %v1027
    %v1076 = vunpack.c.l.b16 %v1028
    %v1077 = vunpack.c.l.b16 %v1029
    %v1078 = vunpack.c.l.b16 %v1030
    %v1079 = vunpack.c.l.b16 %v1031
    %v1080 = vunpack.c.l.b16 %v1032
    %v1081 = vunpack.c.l.b16 %v1033
    %v1082 = vunpack.c.l.b16 %v1034
    %v1083 = vunpack.c.l.b16 %v1035
    %v1084 = vunpack.c.l.b16 %v1036
    %v1085 = vunpack.c.l.b16 %v1037
    %v1086 = vunpack.c.l.b16 %v1038
    %v1087 = vunpack.c.l.b16 %v1039
    %v1088 = vunpack.c.l.b16 %v1040
    %v1089 = vunpack.c.l.b16 %v1041
    %v1090 = vpack.c.b16 %v1067, %v1066
    %v1091 = vpack.c.b16 %v1069, %v1068
    %v1092 = vpack.c.b16 %v1071, %v1070
    %v1093 = vpack.c.b16 %v1073, %v1072
    %v1094 = vpack.c.b16 %v1075, %v1074
    %v1095 = vpack.c.b16 %v1077, %v1076
    %v1096 = vpack.c.b16 %v1079, %v1078
    %v1097 = vpack.c.b16 %v1081, %v1080
    %v1098 = vpack.c.b16 %v1083, %v1082
    %v1099 = vpack.c.b16 %v1085, %v1084
    %v1100 = vpack.c.b16 %v1087, %v1086
    %v1101 = vpack.c.b16 %v1089, %v1088
    %1114 = vmatpush.bf16.msra.mxu0 %v1097
    %1115 = vmatpush.bf16.msra.mxu0 %v1096
    %1116 = vmatpush.bf16.msra.mxu0 %v1095
    %1117 = vmatpush.bf16.msra.mxu0 %v1094
    %1118 = vmatpush.bf16.msra.mxu0 %v1093
    %1119 = vmatpush.bf16.msra.mxu0 %v1092
    %1120 = vmatpush.bf16.msra.mxu0 %v1091
    %1121 = vmatpush.bf16.msra.mxu0 %v1090
    %1122 = vmatmul.bf16.gmra.mxu0 %v848
    %v1123 = vpop.f32.mrf.mxu0
    %v1124 = vadd.f32 0.0, %v1123
    %v1125 = vpop.f32.mrf.mxu0
    %v1126 = vadd.f32 0.0, %v1125
    %1127 = vmatmul.bf16.gmra.mxu0 %v850
    %v1128 = vpop.f32.mrf.mxu0
    %v1129 = vadd.f32 0.0, %v1128
    %v1130 = vpop.f32.mrf.mxu0
    %v1131 = vadd.f32 0.0, %v1130
    %1132 = vdwg.mxu0
    %1133 = vmatpush.bf16.msra.mxu0 0
    %1134 = vmatpush.bf16.msra.mxu0 0
    %1135 = vmatpush.bf16.msra.mxu0 0
    %1136 = vmatpush.bf16.msra.mxu0 0
    %1137 = vmatpush.bf16.msra.mxu0 %v1101
    %1138 = vmatpush.bf16.msra.mxu0 %v1100
    %1139 = vmatpush.bf16.msra.mxu0 %v1099
    %1140 = vmatpush.bf16.msra.mxu0 %v1098
    %1141 = vmatmul.bf16.gmra.mxu0 %v949
    %v1142 = vpop.f32.mrf.mxu0
    %v1143 = vadd.f32 %v1124, %v1142
    %v1144 = vpop.f32.mrf.mxu0
    %v1145 = vadd.f32 %v1126, %v1144
    %1146 = vmatmul.bf16.gmra.mxu0 %v952
    %v1147 = vpop.f32.mrf.mxu0
    %v1148 = vadd.f32 %v1129, %v1147
    %v1149 = vpop.f32.mrf.mxu0
    %v1150 = vadd.f32 %v1131, %v1149
    %1151 = vdwg.mxu0
    %v1152 = vrot.slane %v983, 7
    %v1153 = vrot.slane %v985, 7
    %v1154 = vrot.slane %v988, 7
    %v1155 = vrot.slane %v990, 7
    %vm1156 = vcmp.lt.s32.totalorder %v788, 1
    %v1157 = vsel %vm1156, %v1154, %v1155
    %v1158 = vsel %vm1156, %v1153, %v1154
    %v1159 = vsel %vm1156, %v1152, %v1153
    %v1160 = vsel %vm1156, %v1155, %v1152
    %v1161 = vrot.slane %v1143, 1
    %v1162 = vrot.slane %v1145, 1
    %v1163 = vrot.slane %v1148, 1
    %v1164 = vrot.slane %v1150, 1
    %vm1165 = vcmp.lt.s32.totalorder %v788, 7
    %v1166 = vsel %vm1165, %v1163, %v1164
    %v1167 = vsel %vm1165, %v1162, %v1163
    %v1168 = vsel %vm1165, %v1161, %v1162
    %v1169 = vsel %vm1165, %v1164, %v1161
    %v1170 = vsel %vm840, %v1160, 0.0
    %v1171 = vsel %vm841, %v1159, 0.0
    %v1172 = vsel %vm842, %v1158, 0.0
    %v1173 = vsel %vm843, %v1157, 0.0
    %v1198 = vunpack.c.l.b16 %v993
    %v1199 = vunpack.c.l.b16 %v994
    %v1200 = vunpack.c.l.b16 %v995
    %v1201 = vunpack.c.l.b16 %v996
    %v1202 = vunpack.c.l.b16 %v997
    %v1203 = vunpack.c.l.b16 %v998
    %v1204 = vunpack.c.l.b16 %v999
    %v1205 = vunpack.c.l.b16 %v1000
    %v1206 = vunpack.c.l.b16 %v1001
    %v1207 = vunpack.c.l.b16 %v1002
    %v1208 = vunpack.c.l.b16 %v1003
    %v1209 = vunpack.c.l.b16 %v1004
    %v1210 = vunpack.c.l.b16 %v1005
    %v1211 = vunpack.c.l.b16 %v1006
    %v1212 = vunpack.c.l.b16 %v1007
    %v1213 = vunpack.c.l.b16 %v1008
    %v1214 = vunpack.c.l.b16 %v1009
    %v1215 = vunpack.c.l.b16 %v1010
    %v1216 = vunpack.c.l.b16 %v1011
    %v1217 = vunpack.c.l.b16 %v1012
    %v1218 = vunpack.c.l.b16 %v1013
    %v1219 = vunpack.c.l.b16 %v1014
    %v1220 = vunpack.c.l.b16 %v1015
    %v1221 = vunpack.c.l.b16 %v1016
    %v1222 = vpack.c.b16 %v1199, %v1198
    %v1223 = vpack.c.b16 %v1201, %v1200
    %v1224 = vpack.c.b16 %v1203, %v1202
    %v1225 = vpack.c.b16 %v1205, %v1204
    %v1226 = vpack.c.b16 %v1207, %v1206
    %v1227 = vpack.c.b16 %v1209, %v1208
    %v1228 = vpack.c.b16 %v1211, %v1210
    %v1229 = vpack.c.b16 %v1213, %v1212
    %v1230 = vpack.c.b16 %v1215, %v1214
    %v1231 = vpack.c.b16 %v1217, %v1216
    %v1232 = vpack.c.b16 %v1219, %v1218
    %v1233 = vpack.c.b16 %v1221, %v1220
    %1246 = vmatpush.bf16.msra.mxu0 %v1229
    %1247 = vmatpush.bf16.msra.mxu0 %v1228
    %1248 = vmatpush.bf16.msra.mxu0 %v1227
    %1249 = vmatpush.bf16.msra.mxu0 %v1226
    %1250 = vmatpush.bf16.msra.mxu0 %v1225
    %1251 = vmatpush.bf16.msra.mxu0 %v1224
    %1252 = vmatpush.bf16.msra.mxu0 %v1223
    %1253 = vmatpush.bf16.msra.mxu0 %v1222
    %1254 = vmatmul.bf16.gmra.mxu0 %v848
    %v1255 = vpop.f32.mrf.mxu0
    %v1256 = vadd.f32 %v1170, %v1255
    %v1257 = vpop.f32.mrf.mxu0
    %v1258 = vadd.f32 %v1171, %v1257
    %1259 = vmatmul.bf16.gmra.mxu0 %v850
    %v1260 = vpop.f32.mrf.mxu0
    %v1261 = vadd.f32 %v1172, %v1260
    %v1262 = vpop.f32.mrf.mxu0
    %v1263 = vadd.f32 %v1173, %v1262
    %1264 = vdwg.mxu0
    %1265 = vmatpush.bf16.msra.mxu0 0
    %1266 = vmatpush.bf16.msra.mxu0 0
    %1267 = vmatpush.bf16.msra.mxu0 0
    %1268 = vmatpush.bf16.msra.mxu0 0
    %1269 = vmatpush.bf16.msra.mxu0 %v1233
    %1270 = vmatpush.bf16.msra.mxu0 %v1232
    %1271 = vmatpush.bf16.msra.mxu0 %v1231
    %1272 = vmatpush.bf16.msra.mxu0 %v1230
    %1273 = vmatmul.bf16.gmra.mxu0 %v949
    %v1274 = vpop.f32.mrf.mxu0
    %v1275 = vadd.f32 %v1256, %v1274
    %v1276 = vpop.f32.mrf.mxu0
    %v1277 = vadd.f32 %v1258, %v1276
    %1278 = vmatmul.bf16.gmra.mxu0 %v952
    %v1279 = vpop.f32.mrf.mxu0
    %v1280 = vadd.f32 %v1261, %v1279
    %v1281 = vpop.f32.mrf.mxu0
    %v1282 = vadd.f32 %v1263, %v1281
    %1283 = vdwg.mxu0
    %v1284 = vsel %vm844, %v1168, 0.0
    %v1285 = vsel %vm845, %v1167, 0.0
    %v1286 = vsel %vm846, %v1166, 0.0
    %v1287 = vsel %vm847, %v1169, 0.0
    %v1288 = vadd.f32 %v1275, %v1284
    %v1289 = vadd.f32 %v1277, %v1285
    %v1290 = vadd.f32 %v1280, %v1286
    %v1291 = vadd.f32 %v1282, %v1287
    %v1292 = vperm.slane %v198, 1
    %v1293 = vadd.f32 %v1288, %v1292
    %v1294 = vadd.f32 %v1289, %v1292
    %v1295 = vadd.f32 %v1290, %v1292
    %v1296 = vadd.f32 %v1291, %v1292
    %v1297 = vmax.f32 %v1293, 0.0
    %v1298 = vmax.f32 %v1294, 0.0
    %v1299 = vmax.f32 %v1295, 0.0
    %v1300 = vmax.f32 %v1296, 0.0
    %v1301 = vpack.c.bf16 %v1298, %v1297
    %v1302 = vpack.c.bf16 %v1300, %v1299
    %v1303 = vld [vmem:[#allocation12] sm:$0xf]
    %v1304 = vld [vmem:[#allocation12 + $0x4] sm:$0xf]
    %v1305 = vld [vmem:[#allocation12 + $0x8] sm:$0xf]
    %v1306 = vld [vmem:[#allocation12 + $0xc] sm:$0xf]
    %v1307 = vld [vmem:[#allocation12 + $0x10] sm:$0xf]
    %v1308 = vld [vmem:[#allocation12 + $0x14] sm:$0xf]
    %v1309 = vld [vmem:[#allocation12 + $0x18] sm:$0xf]
    %v1310 = vld [vmem:[#allocation12 + $0x1c] sm:$0xf]
    %v1311 = vld [vmem:[#allocation12 + $0x20] sm:$0xf]
    %v1312 = vld [vmem:[#allocation12 + $0x24] sm:$0xf]
    %v1313 = vld [vmem:[#allocation12 + $0x28] sm:$0xf]
    %v1314 = vld [vmem:[#allocation12 + $0x2c] sm:$0xf]
    %v1315 = vld [vmem:[#allocation12 + $0x30] sm:$0xf]
    %v1316 = vld [vmem:[#allocation12 + $0x34] sm:$0xf]
    %v1317 = vld [vmem:[#allocation12 + $0x38] sm:$0xf]
    %v1318 = vld [vmem:[#allocation12 + $0x3c] sm:$0xf]
    %v1335 = vunpack.c.l.b16 %v1303
    %v1336 = vunpack.c.l.b16 %v1304
    %v1337 = vunpack.c.l.b16 %v1305
    %v1338 = vunpack.c.l.b16 %v1306
    %v1339 = vunpack.c.l.b16 %v1307
    %v1340 = vunpack.c.l.b16 %v1308
    %v1341 = vunpack.c.l.b16 %v1309
    %v1342 = vunpack.c.l.b16 %v1310
    %v1343 = vunpack.c.l.b16 %v1311
    %v1344 = vunpack.c.l.b16 %v1312
    %v1345 = vunpack.c.l.b16 %v1313
    %v1346 = vunpack.c.l.b16 %v1314
    %v1347 = vunpack.c.l.b16 %v1315
    %v1348 = vunpack.c.l.b16 %v1316
    %v1349 = vunpack.c.l.b16 %v1317
    %v1350 = vunpack.c.l.b16 %v1318
    %v1351 = vpack.c.b16 %v1336, %v1335
    %v1352 = vpack.c.b16 %v1338, %v1337
    %v1353 = vpack.c.b16 %v1340, %v1339
    %v1354 = vpack.c.b16 %v1342, %v1341
    %v1355 = vpack.c.b16 %v1344, %v1343
    %v1356 = vpack.c.b16 %v1346, %v1345
    %v1357 = vpack.c.b16 %v1348, %v1347
    %v1358 = vpack.c.b16 %v1350, %v1349
    %1367 = vmatpush.bf16.msra.mxu0 %v1358
    %1368 = vmatpush.bf16.msra.mxu0 %v1357
    %1369 = vmatpush.bf16.msra.mxu0 %v1356
    %1370 = vmatpush.bf16.msra.mxu0 %v1355
    %1371 = vmatpush.bf16.msra.mxu0 %v1354
    %1372 = vmatpush.bf16.msra.mxu0 %v1353
    %1373 = vmatpush.bf16.msra.mxu0 %v1352
    %1374 = vmatpush.bf16.msra.mxu0 %v1351
    %1375 = vmatmul.bf16.gmra.mxu0 %v1301
    %v1376 = vpop.f32.mrf.mxu0
    %v1377 = vadd.f32 0.0, %v1376
    %v1378 = vpop.f32.mrf.mxu0
    %v1379 = vadd.f32 0.0, %v1378
    %1380 = vmatmul.bf16.gmra.mxu0 %v1302
    %v1381 = vpop.f32.mrf.mxu0
    %v1382 = vadd.f32 0.0, %v1381
    %v1383 = vpop.f32.mrf.mxu0
    %v1384 = vadd.f32 0.0, %v1383
    %1385 = vdwg.mxu0
    %s1386 = scalar_lea.vmem [#allocation12], 64
    %v1387 = vld [vmem:[%s1386] sm:$0xf]
    %v1388 = vld [vmem:[%s1386 + $0x4] sm:$0xf]
    %v1389 = vld [vmem:[%s1386 + $0x8] sm:$0xf]
    %v1390 = vld [vmem:[%s1386 + $0xc] sm:$0xf]
    %v1391 = vld [vmem:[%s1386 + $0x10] sm:$0xf]
    %v1392 = vld [vmem:[%s1386 + $0x14] sm:$0xf]
    %v1393 = vld [vmem:[%s1386 + $0x18] sm:$0xf]
    %v1394 = vld [vmem:[%s1386 + $0x1c] sm:$0xf]
    %v1395 = vld [vmem:[%s1386 + $0x20] sm:$0xf]
    %v1396 = vld [vmem:[%s1386 + $0x24] sm:$0xf]
    %v1397 = vld [vmem:[%s1386 + $0x28] sm:$0xf]
    %v1398 = vld [vmem:[%s1386 + $0x2c] sm:$0xf]
    %v1399 = vld [vmem:[%s1386 + $0x30] sm:$0xf]
    %v1400 = vld [vmem:[%s1386 + $0x34] sm:$0xf]
    %v1401 = vld [vmem:[%s1386 + $0x38] sm:$0xf]
    %v1402 = vld [vmem:[%s1386 + $0x3c] sm:$0xf]
    %s1403 = scalar_lea.vmem [#allocation12], 128
    %v1404 = vld [vmem:[%s1403] sm:$0xf]
    %v1405 = vld [vmem:[%s1403 + $0x4] sm:$0xf]
    %v1406 = vld [vmem:[%s1403 + $0x8] sm:$0xf]
    %v1407 = vld [vmem:[%s1403 + $0xc] sm:$0xf]
    %v1408 = vld [vmem:[%s1403 + $0x10] sm:$0xf]
    %v1409 = vld [vmem:[%s1403 + $0x14] sm:$0xf]
    %v1410 = vld [vmem:[%s1403 + $0x18] sm:$0xf]
    %v1411 = vld [vmem:[%s1403 + $0x1c] sm:$0xf]
    %v1412 = vld [vmem:[%s1403 + $0x20] sm:$0xf]
    %v1413 = vld [vmem:[%s1403 + $0x24] sm:$0xf]
    %v1414 = vld [vmem:[%s1403 + $0x28] sm:$0xf]
    %v1415 = vld [vmem:[%s1403 + $0x2c] sm:$0xf]
    %v1416 = vld [vmem:[%s1403 + $0x30] sm:$0xf]
    %v1417 = vld [vmem:[%s1403 + $0x34] sm:$0xf]
    %v1418 = vld [vmem:[%s1403 + $0x38] sm:$0xf]
    %v1419 = vld [vmem:[%s1403 + $0x3c] sm:$0xf]
    %v1436 = vunpack.c.l.b16 %v1404
    %v1437 = vunpack.c.l.b16 %v1405
    %v1438 = vunpack.c.l.b16 %v1406
    %v1439 = vunpack.c.l.b16 %v1407
    %v1440 = vunpack.c.l.b16 %v1408
    %v1441 = vunpack.c.l.b16 %v1409
    %v1442 = vunpack.c.l.b16 %v1410
    %v1443 = vunpack.c.l.b16 %v1411
    %v1444 = vunpack.c.l.b16 %v1412
    %v1445 = vunpack.c.l.b16 %v1413
    %v1446 = vunpack.c.l.b16 %v1414
    %v1447 = vunpack.c.l.b16 %v1415
    %v1448 = vunpack.c.l.b16 %v1416
    %v1449 = vunpack.c.l.b16 %v1417
    %v1450 = vunpack.c.l.b16 %v1418
    %v1451 = vunpack.c.l.b16 %v1419
    %v1452 = vpack.c.b16 %v1437, %v1436
    %v1453 = vpack.c.b16 %v1439, %v1438
    %v1454 = vpack.c.b16 %v1441, %v1440
    %v1455 = vpack.c.b16 %v1443, %v1442
    %v1456 = vpack.c.b16 %v1445, %v1444
    %v1457 = vpack.c.b16 %v1447, %v1446
    %v1458 = vpack.c.b16 %v1449, %v1448
    %v1459 = vpack.c.b16 %v1451, %v1450
    %1468 = vmatpush.bf16.msra.mxu0 %v1459
    %1469 = vmatpush.bf16.msra.mxu0 %v1458
    %1470 = vmatpush.bf16.msra.mxu0 %v1457
    %1471 = vmatpush.bf16.msra.mxu0 %v1456
    %1472 = vmatpush.bf16.msra.mxu0 %v1455
    %1473 = vmatpush.bf16.msra.mxu0 %v1454
    %1474 = vmatpush.bf16.msra.mxu0 %v1453
    %1475 = vmatpush.bf16.msra.mxu0 %v1452
    %1476 = vmatmul.bf16.gmra.mxu0 %v1301
    %v1477 = vpop.f32.mrf.mxu0
    %v1478 = vadd.f32 0.0, %v1477
    %v1479 = vpop.f32.mrf.mxu0
    %v1480 = vadd.f32 0.0, %v1479
    %1481 = vmatmul.bf16.gmra.mxu0 %v1302
    %v1482 = vpop.f32.mrf.mxu0
    %v1483 = vadd.f32 0.0, %v1482
    %v1484 = vpop.f32.mrf.mxu0
    %v1485 = vadd.f32 0.0, %v1484
    %1486 = vdwg.mxu0
    %v1487 = vrot.slane %v1377, 7
    %v1488 = vrot.slane %v1379, 7
    %v1489 = vrot.slane %v1382, 7
    %v1490 = vrot.slane %v1384, 7
    %v1491 = vsel %vm1156, %v1489, %v1490
    %v1492 = vsel %vm1156, %v1488, %v1489
    %v1493 = vsel %vm1156, %v1487, %v1488
    %v1494 = vsel %vm1156, %v1490, %v1487
    %v1495 = vrot.slane %v1478, 1
    %v1496 = vrot.slane %v1480, 1
    %v1497 = vrot.slane %v1483, 1
    %v1498 = vrot.slane %v1485, 1
    %v1499 = vsel %vm1165, %v1497, %v1498
    %v1500 = vsel %vm1165, %v1496, %v1497
    %v1501 = vsel %vm1165, %v1495, %v1496
    %v1502 = vsel %vm1165, %v1498, %v1495
    %v1503 = vsel %vm840, %v1494, 0.0
    %v1504 = vsel %vm841, %v1493, 0.0
    %v1505 = vsel %vm842, %v1492, 0.0
    %v1506 = vsel %vm843, %v1491, 0.0
    %v1523 = vunpack.c.l.b16 %v1387
    %v1524 = vunpack.c.l.b16 %v1388
    %v1525 = vunpack.c.l.b16 %v1389
    %v1526 = vunpack.c.l.b16 %v1390
    %v1527 = vunpack.c.l.b16 %v1391
    %v1528 = vunpack.c.l.b16 %v1392
    %v1529 = vunpack.c.l.b16 %v1393
    %v1530 = vunpack.c.l.b16 %v1394
    %v1531 = vunpack.c.l.b16 %v1395
    %v1532 = vunpack.c.l.b16 %v1396
    %v1533 = vunpack.c.l.b16 %v1397
    %v1534 = vunpack.c.l.b16 %v1398
    %v1535 = vunpack.c.l.b16 %v1399
    %v1536 = vunpack.c.l.b16 %v1400
    %v1537 = vunpack.c.l.b16 %v1401
    %v1538 = vunpack.c.l.b16 %v1402
    %v1539 = vpack.c.b16 %v1524, %v1523
    %v1540 = vpack.c.b16 %v1526, %v1525
    %v1541 = vpack.c.b16 %v1528, %v1527
    %v1542 = vpack.c.b16 %v1530, %v1529
    %v1543 = vpack.c.b16 %v1532, %v1531
    %v1544 = vpack.c.b16 %v1534, %v1533
    %v1545 = vpack.c.b16 %v1536, %v1535
    %v1546 = vpack.c.b16 %v1538, %v1537
    %1555 = vmatpush.bf16.msra.mxu0 %v1546
    %1556 = vmatpush.bf16.msra.mxu0 %v1545
    %1557 = vmatpush.bf16.msra.mxu0 %v1544
    %1558 = vmatpush.bf16.msra.mxu0 %v1543
    %1559 = vmatpush.bf16.msra.mxu0 %v1542
    %1560 = vmatpush.bf16.msra.mxu0 %v1541
    %1561 = vmatpush.bf16.msra.mxu0 %v1540
    %1562 = vmatpush.bf16.msra.mxu0 %v1539
    %1563 = vmatmul.bf16.gmra.mxu0 %v1301
    %v1564 = vpop.f32.mrf.mxu0
    %v1565 = vadd.f32 %v1503, %v1564
    %v1566 = vpop.f32.mrf.mxu0
    %v1567 = vadd.f32 %v1504, %v1566
    %1568 = vmatmul.bf16.gmra.mxu0 %v1302
    %v1569 = vpop.f32.mrf.mxu0
    %v1570 = vadd.f32 %v1505, %v1569
    %v1571 = vpop.f32.mrf.mxu0
    %v1572 = vadd.f32 %v1506, %v1571
    %1573 = vdwg.mxu0
    %v1574 = vsel %vm844, %v1501, 0.0
    %v1575 = vsel %vm845, %v1500, 0.0
    %v1576 = vsel %vm846, %v1499, 0.0
    %v1577 = vsel %vm847, %v1502, 0.0
    %v1578 = vadd.f32 %v1565, %v1574
    %v1579 = vadd.f32 %v1567, %v1575
    %v1580 = vadd.f32 %v1570, %v1576
    %v1581 = vadd.f32 %v1572, %v1577
    %v1582 = vperm.slane %v198, 2
    %v1583 = vadd.f32 %v1578, %v1582
    %v1584 = vadd.f32 %v1579, %v1582
    %v1585 = vadd.f32 %v1580, %v1582
    %v1586 = vadd.f32 %v1581, %v1582
    %v1587 = vmax.f32 %v1583, 0.0
    %v1588 = vmax.f32 %v1584, 0.0
    %v1589 = vmax.f32 %v1585, 0.0
    %v1590 = vmax.f32 %v1586, 0.0
    %v1591 = vmax.f32 %v1587, %v1588
    %v1592 = vrot.slane %v1591, 4
    %v1593 = vmax.f32 %v1591, %v1592
    %v1594 = vrot.slane %v1593, 2
    %v1595 = vmax.f32 %v1593, %v1594
    %v1596 = vrot.slane %v1595, 1
    %v1597 = vmax.f32 %v1595, %v1596
    %v1598 = vmax.f32 %v1589, %v1590
    %v1599 = vrot.slane %v1598, 4
    %v1600 = vmax.f32 %v1598, %v1599
    %v1601 = vrot.slane %v1600, 2
    %v1602 = vmax.f32 %v1600, %v1601
    %v1603 = vrot.slane %v1602, 1
    %v1604 = vmax.f32 %v1602, %v1603
    %v1605 = vld [vmem:[%s9] sm:$0xff]
    %v1606 = vld [vmem:[%s9 + $0x8] sm:$0xff]
    %v1607 = vld [vmem:[%s9 + $0x10] sm:$0xff]
    %v1608 = vld [vmem:[%s9 + $0x18] sm:$0xff]
    %v1609 = vld [vmem:[%s9 + $0x20] sm:$0xff]
    %v1610 = vld [vmem:[%s9 + $0x28] sm:$0xff]
    %v1611 = vld [vmem:[%s9 + $0x30] sm:$0xff]
    %v1612 = vld [vmem:[%s9 + $0x38] sm:$0xff]
    %v1613 = vld [vmem:[%s9 + $0x40] sm:$0xff]
    %v1614 = vld [vmem:[%s9 + $0x48] sm:$0xff]
    %v1615 = vld [vmem:[%s9 + $0x50] sm:$0xff]
    %v1616 = vld [vmem:[%s9 + $0x58] sm:$0xff]
    %v1617 = vld [vmem:[%s9 + $0x60] sm:$0xff]
    %v1618 = vld [vmem:[%s9 + $0x68] sm:$0xff]
    %v1619 = vld [vmem:[%s9 + $0x70] sm:$0xff]
    %v1620 = vld [vmem:[%s9 + $0x78] sm:$0xff]
    %v1621 = vld [vmem:[%s9 + $0x80] sm:$0xff]
    %v1622 = vld [vmem:[%s9 + $0x88] sm:$0xff]
    %v1623 = vld [vmem:[%s9 + $0x90] sm:$0xff]
    %v1624 = vld [vmem:[%s9 + $0x98] sm:$0xff]
    %v1625 = vld [vmem:[%s9 + $0xa0] sm:$0xff]
    %v1626 = vld [vmem:[%s9 + $0xa8] sm:$0xff]
    %v1627 = vld [vmem:[%s9 + $0xb0] sm:$0xff]
    %v1628 = vld [vmem:[%s9 + $0xb8] sm:$0xff]
    %v1629 = vld [vmem:[%s9 + $0xc0] sm:$0xff]
    %v1630 = vld [vmem:[%s9 + $0xc8] sm:$0xff]
    %v1631 = vld [vmem:[%s9 + $0xd0] sm:$0xff]
    %v1632 = vld [vmem:[%s9 + $0xd8] sm:$0xff]
    %v1633 = vld [vmem:[%s9 + $0xe0] sm:$0xff]
    %v1634 = vld [vmem:[%s9 + $0xe8] sm:$0xff]
    %v1635 = vld [vmem:[%s9 + $0xf0] sm:$0xff]
    %v1636 = vld [vmem:[%s9 + $0xf8] sm:$0xff]
    %v1637 = vperm.slane %v198, 3
    %v1638 = vperm.slane %v199, 3
    %v1641 = vsel %vm389, %v1604, %v1597
    %1643 = vmatpush.msra.mxu0 %v1635
    %1644 = vmatpush.msra.mxu0 %v1633
    %1645 = vmatpush.msra.mxu0 %v1631
    %1646 = vmatpush.msra.mxu0 %v1629
    %1647 = vmatpush.msra.mxu0 %v1627
    %1648 = vmatpush.msra.mxu0 %v1625
    %1649 = vmatpush.msra.mxu0 %v1623
    %1650 = vmatpush.msra.mxu0 %v1621
    %1651 = vmatpush.msra.mxu0 %v1619
    %1652 = vmatpush.msra.mxu0 %v1617
    %1653 = vmatpush.msra.mxu0 %v1615
    %1654 = vmatpush.msra.mxu0 %v1613
    %1655 = vmatpush.msra.mxu0 %v1611
    %1656 = vmatpush.msra.mxu0 %v1609
    %1657 = vmatpush.msra.mxu0 %v1607
    %1658 = vmatpush.msra.mxu0 %v1605
    %1659 = vmatmul.f32.gmra.mxu0 %v1641
    %v1660 = vpop.f32.mrf.mxu0
    %v1661 = vadd.f32 %v1637, %v1660
    %1662 = vdwg.mxu0
    %1663 = vmatpush.msra.mxu0 %v1636
    %1664 = vmatpush.msra.mxu0 %v1634
    %1665 = vmatpush.msra.mxu0 %v1632
    %1666 = vmatpush.msra.mxu0 %v1630
    %1667 = vmatpush.msra.mxu0 %v1628
    %1668 = vmatpush.msra.mxu0 %v1626
    %1669 = vmatpush.msra.mxu0 %v1624
    %1670 = vmatpush.msra.mxu0 %v1622
    %1671 = vmatpush.msra.mxu0 %v1620
    %1672 = vmatpush.msra.mxu0 %v1618
    %1673 = vmatpush.msra.mxu0 %v1616
    %1674 = vmatpush.msra.mxu0 %v1614
    %1675 = vmatpush.msra.mxu0 %v1612
    %1676 = vmatpush.msra.mxu0 %v1610
    %1677 = vmatpush.msra.mxu0 %v1608
    %1678 = vmatpush.msra.mxu0 %v1606
    %1679 = vmatmul.f32.gmra.mxu0 %v1641
    %v1680 = vpop.f32.mrf.mxu0
    %v1681 = vadd.f32 %v1638, %v1680
    %1682 = vdwg.mxu0
    %v1683 = vmax.f32 %v1661, 0.0
    %v1684 = vmax.f32 %v1681, 0.0
    %v1685 = vld [vmem:[#allocation13] sm:$0xff]
    %v1686 = vld [vmem:[#allocation13 + $0x8] sm:$0xff]
    %v1687 = vld [vmem:[#allocation13 + $0x10] sm:$0xff]
    %v1688 = vld [vmem:[#allocation13 + $0x18] sm:$0xff]
    %v1689 = vld [vmem:[#allocation13 + $0x20] sm:$0xff]
    %v1690 = vld [vmem:[#allocation13 + $0x28] sm:$0xff]
    %v1691 = vld [vmem:[#allocation13 + $0x30] sm:$0xff]
    %v1692 = vld [vmem:[#allocation13 + $0x38] sm:$0xff]
    %v1693 = vld [vmem:[#allocation13 + $0x40] sm:$0xff]
    %v1694 = vld [vmem:[#allocation13 + $0x48] sm:$0xff]
    %v1695 = vld [vmem:[#allocation13 + $0x50] sm:$0xff]
    %v1696 = vld [vmem:[#allocation13 + $0x58] sm:$0xff]
    %v1697 = vld [vmem:[#allocation13 + $0x60] sm:$0xff]
    %v1698 = vld [vmem:[#allocation13 + $0x68] sm:$0xff]
    %v1699 = vld [vmem:[#allocation13 + $0x70] sm:$0xff]
    %v1700 = vld [vmem:[#allocation13 + $0x78] sm:$0xff]
    %v1701 = vld [vmem:[#allocation13 + $0x80] sm:$0xff]
    %v1702 = vld [vmem:[#allocation13 + $0x88] sm:$0xff]
    %v1703 = vld [vmem:[#allocation13 + $0x90] sm:$0xff]
    %v1704 = vld [vmem:[#allocation13 + $0x98] sm:$0xff]
    %v1705 = vld [vmem:[#allocation13 + $0xa0] sm:$0xff]
    %v1706 = vld [vmem:[#allocation13 + $0xa8] sm:$0xff]
    %v1707 = vld [vmem:[#allocation13 + $0xb0] sm:$0xff]
    %v1708 = vld [vmem:[#allocation13 + $0xb8] sm:$0xff]
    %v1709 = vld [vmem:[#allocation13 + $0xc0] sm:$0xff]
    %v1710 = vld [vmem:[#allocation13 + $0xc8] sm:$0xff]
    %v1711 = vld [vmem:[#allocation13 + $0xd0] sm:$0xff]
    %v1712 = vld [vmem:[#allocation13 + $0xd8] sm:$0xff]
    %v1713 = vld [vmem:[#allocation13 + $0xe0] sm:$0xff]
    %v1714 = vld [vmem:[#allocation13 + $0xe8] sm:$0xff]
    %v1715 = vld [vmem:[#allocation13 + $0xf0] sm:$0xff]
    %v1716 = vld [vmem:[#allocation13 + $0xf8] sm:$0xff]
    %v1717 = vperm.slane %v198, 4
    %1718 = vmatpush.msra.mxu0 %v1700
    %1719 = vmatpush.msra.mxu0 %v1699
    %1720 = vmatpush.msra.mxu0 %v1698
    %1721 = vmatpush.msra.mxu0 %v1697
    %1722 = vmatpush.msra.mxu0 %v1696
    %1723 = vmatpush.msra.mxu0 %v1695
    %1724 = vmatpush.msra.mxu0 %v1694
    %1725 = vmatpush.msra.mxu0 %v1693
    %1726 = vmatpush.msra.mxu0 %v1692
    %1727 = vmatpush.msra.mxu0 %v1691
    %1728 = vmatpush.msra.mxu0 %v1690
    %1729 = vmatpush.msra.mxu0 %v1689
    %1730 = vmatpush.msra.mxu0 %v1688
    %1731 = vmatpush.msra.mxu0 %v1687
    %1732 = vmatpush.msra.mxu0 %v1686
    %1733 = vmatpush.msra.mxu0 %v1685
    %1734 = vmatmul.f32.gmra.mxu0 %v1683
    %v1735 = vpop.f32.mrf.mxu0
    %v1736 = vadd.f32 %v1717, %v1735
    %1737 = vdwg.mxu0
    %1738 = vmatpush.msra.mxu0 %v1716
    %1739 = vmatpush.msra.mxu0 %v1715
    %1740 = vmatpush.msra.mxu0 %v1714
    %1741 = vmatpush.msra.mxu0 %v1713
    %1742 = vmatpush.msra.mxu0 %v1712
    %1743 = vmatpush.msra.mxu0 %v1711
    %1744 = vmatpush.msra.mxu0 %v1710
    %1745 = vmatpush.msra.mxu0 %v1709
    %1746 = vmatpush.msra.mxu0 %v1708
    %1747 = vmatpush.msra.mxu0 %v1707
    %1748 = vmatpush.msra.mxu0 %v1706
    %1749 = vmatpush.msra.mxu0 %v1705
    %1750 = vmatpush.msra.mxu0 %v1704
    %1751 = vmatpush.msra.mxu0 %v1703
    %1752 = vmatpush.msra.mxu0 %v1702
    %1753 = vmatpush.msra.mxu0 %v1701
    %1754 = vmatmul.f32.gmra.mxu0 %v1684
    %v1755 = vpop.f32.mrf.mxu0
    %v1756 = vadd.f32 %v1736, %v1755
    %1757 = vdwg.mxu0
    %v1758 = vmax.f32 %v1756, 0.0
    %v1759 = vld [vmem:[#allocation15] sm:$0xff]
    %v1760 = vld [vmem:[#allocation15 + $0x8] sm:$0xff]
    %v1761 = vld [vmem:[#allocation15 + $0x10] sm:$0xff]
    %v1762 = vld [vmem:[#allocation15 + $0x18] sm:$0xff]
    %v1763 = vld [vmem:[#allocation15 + $0x20] sm:$0xff]
    %v1764 = vld [vmem:[#allocation15 + $0x28] sm:$0xff]
    %v1765 = vld [vmem:[#allocation15 + $0x30] sm:$0xff]
    %v1766 = vld [vmem:[#allocation15 + $0x38] sm:$0xff]
    %v1767 = vld [vmem:[#allocation15 + $0x40] sm:$0xff]
    %v1768 = vld [vmem:[#allocation15 + $0x48] sm:$0xff]
    %v1769 = vld [vmem:[#allocation15 + $0x50] sm:$0xff]
    %v1770 = vld [vmem:[#allocation15 + $0x58] sm:$0xff]
    %v1771 = vld [vmem:[#allocation15 + $0x60] sm:$0xff]
    %v1772 = vld [vmem:[#allocation15 + $0x68] sm:$0xff]
    %v1773 = vld [vmem:[#allocation15 + $0x70] sm:$0xff]
    %v1774 = vld [vmem:[#allocation15 + $0x78] sm:$0xff]
    %v1775 = vld [vmem:[#allocation15 + $0x80] sm:$0xff]
    %v1776 = vld [vmem:[#allocation15 + $0x88] sm:$0xff]
    %v1777 = vld [vmem:[#allocation15 + $0x90] sm:$0xff]
    %v1778 = vld [vmem:[#allocation15 + $0x98] sm:$0xff]
    %v1779 = vld [vmem:[#allocation15 + $0xa0] sm:$0xff]
    %v1780 = vld [vmem:[#allocation15 + $0xa8] sm:$0xff]
    %v1781 = vld [vmem:[#allocation15 + $0xb0] sm:$0xff]
    %v1782 = vld [vmem:[#allocation15 + $0xb8] sm:$0xff]
    %v1783 = vld [vmem:[#allocation15 + $0xc0] sm:$0xff]
    %v1784 = vld [vmem:[#allocation15 + $0xc8] sm:$0xff]
    %v1785 = vld [vmem:[#allocation15 + $0xd0] sm:$0xff]
    %v1786 = vld [vmem:[#allocation15 + $0xd8] sm:$0xff]
    %v1787 = vld [vmem:[#allocation15 + $0xe0] sm:$0xff]
    %v1788 = vld [vmem:[#allocation15 + $0xe8] sm:$0xff]
    %v1789 = vld [vmem:[#allocation15 + $0xf0] sm:$0xff]
    %v1790 = vld [vmem:[#allocation15 + $0xf8] sm:$0xff]
    %v1791 = vld [vmem:[#allocation15 + $0x100] sm:$0xff]
    %v1792 = vld [vmem:[#allocation15 + $0x108] sm:$0xff]
    %v1793 = vld [vmem:[#allocation15 + $0x110] sm:$0xff]
    %v1794 = vld [vmem:[#allocation15 + $0x118] sm:$0xff]
    %v1795 = vld [vmem:[#allocation15 + $0x120] sm:$0xff]
    %v1796 = vld [vmem:[#allocation15 + $0x128] sm:$0xff]
    %v1797 = vld [vmem:[#allocation15 + $0x130] sm:$0xff]
    %v1798 = vld [vmem:[#allocation15 + $0x138] sm:$0xff]
    %v1799 = vld [vmem:[#allocation15 + $0x140] sm:$0xff]
    %v1800 = vld [vmem:[#allocation15 + $0x148] sm:$0xff]
    %v1801 = vld [vmem:[#allocation15 + $0x150] sm:$0xff]
    %v1802 = vld [vmem:[#allocation15 + $0x158] sm:$0xff]
    %v1803 = vld [vmem:[#allocation15 + $0x160] sm:$0xff]
    %v1804 = vld [vmem:[#allocation15 + $0x168] sm:$0xff]
    %v1805 = vld [vmem:[#allocation15 + $0x170] sm:$0xff]
    %v1806 = vld [vmem:[#allocation15 + $0x178] sm:$0xff]
    %v1807 = vld [vmem:[#allocation15 + $0x180] sm:$0xff]
    %v1808 = vld [vmem:[#allocation15 + $0x188] sm:$0xff]
    %v1809 = vld [vmem:[#allocation15 + $0x190] sm:$0xff]
    %v1810 = vld [vmem:[#allocation15 + $0x198] sm:$0xff]
    %v1811 = vld [vmem:[#allocation15 + $0x1a0] sm:$0xff]
    %v1812 = vld [vmem:[#allocation15 + $0x1a8] sm:$0xff]
    %v1813 = vld [vmem:[#allocation15 + $0x1b0] sm:$0xff]
    %v1814 = vld [vmem:[#allocation15 + $0x1b8] sm:$0xff]
    %v1815 = vld [vmem:[#allocation15 + $0x1c0] sm:$0xff]
    %v1816 = vld [vmem:[#allocation15 + $0x1c8] sm:$0xff]
    %v1817 = vld [vmem:[#allocation15 + $0x1d0] sm:$0xff]
    %v1818 = vld [vmem:[#allocation15 + $0x1d8] sm:$0xff]
    %v1819 = vld [vmem:[#allocation15 + $0x1e0] sm:$0xff]
    %v1820 = vld [vmem:[#allocation15 + $0x1e8] sm:$0xff]
    %v1821 = vld [vmem:[#allocation15 + $0x1f0] sm:$0xff]
    %v1822 = vld [vmem:[#allocation15 + $0x1f8] sm:$0xff]
    %v1823 = vperm.slane %v198, 6
    %v1824 = vperm.slane %v199, 6
    %1825 = vmatpush.msra.mxu0 %v1789
    %1826 = vmatpush.msra.mxu0 %v1787
    %1827 = vmatpush.msra.mxu0 %v1785
    %1828 = vmatpush.msra.mxu0 %v1783
    %1829 = vmatpush.msra.mxu0 %v1781
    %1830 = vmatpush.msra.mxu0 %v1779
    %1831 = vmatpush.msra.mxu0 %v1777
    %1832 = vmatpush.msra.mxu0 %v1775
    %1833 = vmatpush.msra.mxu0 %v1773
    %1834 = vmatpush.msra.mxu0 %v1771
    %1835 = vmatpush.msra.mxu0 %v1769
    %1836 = vmatpush.msra.mxu0 %v1767
    %1837 = vmatpush.msra.mxu0 %v1765
    %1838 = vmatpush.msra.mxu0 %v1763
    %1839 = vmatpush.msra.mxu0 %v1761
    %1840 = vmatpush.msra.mxu0 %v1759
    %1841 = vmatmul.f32.gmra.mxu0 %v228
    %v1842 = vpop.f32.mrf.mxu0
    %v1843 = vadd.f32 %v1823, %v1842
    %1844 = vdwg.mxu0
    %1845 = vmatpush.msra.mxu0 %v1821
    %1846 = vmatpush.msra.mxu0 %v1819
    %1847 = vmatpush.msra.mxu0 %v1817
    %1848 = vmatpush.msra.mxu0 %v1815
    %1849 = vmatpush.msra.mxu0 %v1813
    %1850 = vmatpush.msra.mxu0 %v1811
    %1851 = vmatpush.msra.mxu0 %v1809
    %1852 = vmatpush.msra.mxu0 %v1807
    %1853 = vmatpush.msra.mxu0 %v1805
    %1854 = vmatpush.msra.mxu0 %v1803
    %1855 = vmatpush.msra.mxu0 %v1801
    %1856 = vmatpush.msra.mxu0 %v1799
    %1857 = vmatpush.msra.mxu0 %v1797
    %1858 = vmatpush.msra.mxu0 %v1795
    %1859 = vmatpush.msra.mxu0 %v1793
    %1860 = vmatpush.msra.mxu0 %v1791
    %1861 = vmatmul.f32.gmra.mxu0 %v1758
    %v1862 = vpop.f32.mrf.mxu0
    %v1863 = vadd.f32 %v1843, %v1862
    %1864 = vdwg.mxu0
    %1865 = vmatpush.msra.mxu0 %v1790
    %1866 = vmatpush.msra.mxu0 %v1788
    %1867 = vmatpush.msra.mxu0 %v1786
    %1868 = vmatpush.msra.mxu0 %v1784
    %1869 = vmatpush.msra.mxu0 %v1782
    %1870 = vmatpush.msra.mxu0 %v1780
    %1871 = vmatpush.msra.mxu0 %v1778
    %1872 = vmatpush.msra.mxu0 %v1776
    %1873 = vmatpush.msra.mxu0 %v1774
    %1874 = vmatpush.msra.mxu0 %v1772
    %1875 = vmatpush.msra.mxu0 %v1770
    %1876 = vmatpush.msra.mxu0 %v1768
    %1877 = vmatpush.msra.mxu0 %v1766
    %1878 = vmatpush.msra.mxu0 %v1764
    %1879 = vmatpush.msra.mxu0 %v1762
    %1880 = vmatpush.msra.mxu0 %v1760
    %1881 = vmatmul.f32.gmra.mxu0 %v228
    %v1882 = vpop.f32.mrf.mxu0
    %v1883 = vadd.f32 %v1824, %v1882
    %1884 = vdwg.mxu0
    %1885 = vmatpush.msra.mxu0 %v1822
    %1886 = vmatpush.msra.mxu0 %v1820
    %1887 = vmatpush.msra.mxu0 %v1818
    %1888 = vmatpush.msra.mxu0 %v1816
    %1889 = vmatpush.msra.mxu0 %v1814
    %1890 = vmatpush.msra.mxu0 %v1812
    %1891 = vmatpush.msra.mxu0 %v1810
    %1892 = vmatpush.msra.mxu0 %v1808
    %1893 = vmatpush.msra.mxu0 %v1806
    %1894 = vmatpush.msra.mxu0 %v1804
    %1895 = vmatpush.msra.mxu0 %v1802
    %1896 = vmatpush.msra.mxu0 %v1800
    %1897 = vmatpush.msra.mxu0 %v1798
    %1898 = vmatpush.msra.mxu0 %v1796
    %1899 = vmatpush.msra.mxu0 %v1794
    %1900 = vmatpush.msra.mxu0 %v1792
    %1901 = vmatmul.f32.gmra.mxu0 %v1758
    %v1902 = vpop.f32.mrf.mxu0
    %v1903 = vadd.f32 %v1883, %v1902
    %1904 = vdwg.mxu0
    %v1905 = vmax.f32 %v1863, 0.0
    %v1906 = vmax.f32 %v1903, 0.0
    %v1907 = vld [vmem:[#allocation16] sm:$0xff]
    %v1908 = vld [vmem:[#allocation16 + $0x8] sm:$0xff]
    %v1909 = vld [vmem:[#allocation16 + $0x10] sm:$0xff]
    %v1910 = vld [vmem:[#allocation16 + $0x18] sm:$0xff]
    %v1911 = vld [vmem:[#allocation16 + $0x20] sm:$0xff]
    %v1912 = vld [vmem:[#allocation16 + $0x28] sm:$0xff]
    %v1913 = vld [vmem:[#allocation16 + $0x30] sm:$0xff]
    %v1914 = vld [vmem:[#allocation16 + $0x38] sm:$0xff]
    %v1915 = vld [vmem:[#allocation16 + $0x40] sm:$0xff]
    %v1916 = vld [vmem:[#allocation16 + $0x48] sm:$0xff]
    %v1917 = vld [vmem:[#allocation16 + $0x50] sm:$0xff]
    %v1918 = vld [vmem:[#allocation16 + $0x58] sm:$0xff]
    %v1919 = vld [vmem:[#allocation16 + $0x60] sm:$0xff]
    %v1920 = vld [vmem:[#allocation16 + $0x68] sm:$0xff]
    %v1921 = vld [vmem:[#allocation16 + $0x70] sm:$0xff]
    %v1922 = vld [vmem:[#allocation16 + $0x78] sm:$0xff]
    %v1923 = vld [vmem:[#allocation16 + $0x80] sm:$0xff]
    %v1924 = vld [vmem:[#allocation16 + $0x88] sm:$0xff]
    %v1925 = vld [vmem:[#allocation16 + $0x90] sm:$0xff]
    %v1926 = vld [vmem:[#allocation16 + $0x98] sm:$0xff]
    %v1927 = vld [vmem:[#allocation16 + $0xa0] sm:$0xff]
    %v1928 = vld [vmem:[#allocation16 + $0xa8] sm:$0xff]
    %v1929 = vld [vmem:[#allocation16 + $0xb0] sm:$0xff]
    %v1930 = vld [vmem:[#allocation16 + $0xb8] sm:$0xff]
    %v1931 = vld [vmem:[#allocation16 + $0xc0] sm:$0xff]
    %v1932 = vld [vmem:[#allocation16 + $0xc8] sm:$0xff]
    %v1933 = vld [vmem:[#allocation16 + $0xd0] sm:$0xff]
    %v1934 = vld [vmem:[#allocation16 + $0xd8] sm:$0xff]
    %v1935 = vld [vmem:[#allocation16 + $0xe0] sm:$0xff]
    %v1936 = vld [vmem:[#allocation16 + $0xe8] sm:$0xff]
    %v1937 = vld [vmem:[#allocation16 + $0xf0] sm:$0xff]
    %v1938 = vld [vmem:[#allocation16 + $0xf8] sm:$0xff]
    %v1939 = vperm.slane %v198, 7
    %1940 = vmatpush.msra.mxu0 %v1922
    %1941 = vmatpush.msra.mxu0 %v1921
    %1942 = vmatpush.msra.mxu0 %v1920
    %1943 = vmatpush.msra.mxu0 %v1919
    %1944 = vmatpush.msra.mxu0 %v1918
    %1945 = vmatpush.msra.mxu0 %v1917
    %1946 = vmatpush.msra.mxu0 %v1916
    %1947 = vmatpush.msra.mxu0 %v1915
    %1948 = vmatpush.msra.mxu0 %v1914
    %1949 = vmatpush.msra.mxu0 %v1913
    %1950 = vmatpush.msra.mxu0 %v1912
    %1951 = vmatpush.msra.mxu0 %v1911
    %1952 = vmatpush.msra.mxu0 %v1910
    %1953 = vmatpush.msra.mxu0 %v1909
    %1954 = vmatpush.msra.mxu0 %v1908
    %1955 = vmatpush.msra.mxu0 %v1907
    %1956 = vmatmul.f32.gmra.mxu0 %v1905
    %v1957 = vpop.f32.mrf.mxu0
    %v1958 = vadd.f32 %v1939, %v1957
    %1959 = vdwg.mxu0
    %1960 = vmatpush.msra.mxu0 %v1938
    %1961 = vmatpush.msra.mxu0 %v1937
    %1962 = vmatpush.msra.mxu0 %v1936
    %1963 = vmatpush.msra.mxu0 %v1935
    %1964 = vmatpush.msra.mxu0 %v1934
    %1965 = vmatpush.msra.mxu0 %v1933
    %1966 = vmatpush.msra.mxu0 %v1932
    %1967 = vmatpush.msra.mxu0 %v1931
    %1968 = vmatpush.msra.mxu0 %v1930
    %1969 = vmatpush.msra.mxu0 %v1929
    %1970 = vmatpush.msra.mxu0 %v1928
    %1971 = vmatpush.msra.mxu0 %v1927
    %1972 = vmatpush.msra.mxu0 %v1926
    %1973 = vmatpush.msra.mxu0 %v1925
    %1974 = vmatpush.msra.mxu0 %v1924
    %1975 = vmatpush.msra.mxu0 %v1923
    %1976 = vmatmul.f32.gmra.mxu0 %v1906
    %v1977 = vpop.f32.mrf.mxu0
    %v1978 = vadd.f32 %v1958, %v1977
    %1979 = vdwg.mxu0
    %1980 = vst [vmem:[#allocation19] sm:$0x3] %v1978
    // Predicated region
    $region98: #{tpu_custom_call.1} parent=1 // pred_check
      _
    $region99: #{tpu_custom_call.1} parent=1 // pred_check_branch
      %1982 = sbr.rel (0) target = $region101
    $region100: #{tpu_custom_call.1} parent=1 // pred_region
      %1984 = vsyncadd [#allocation4], 0
      %s1986 = sshll.u32 [#allocation19], 4
      %s1987 = int_to_ptr.vmem [resolvable:$true] %s1986
      %s1988 = sshll.u32 %s14, 4
      %s1989 = int_to_ptr.hbm [resolvable:$true] %s1988
      %1991 = dma.vmem_to_hbm [thread:$0]  %s1987, 32, %s1989, [#allocation4]
    $region101: #{tpu_custom_call.1} parent=1 // pred_fallthru
      _
    // Predicated region
    $region102: #{tpu_custom_call.1} parent=1 // pred_check
      _
    $region103: #{tpu_custom_call.1} parent=1 // pred_check_branch
      %1993 = sbr.rel (0) target = $region105
    $region104: #{tpu_custom_call.1} parent=1 // pred_region
      %1995 = dma.done [#allocation4], 32
    $region105: #{tpu_custom_call.1} parent=1 // pred_fallthru
      _
    %1996 = vsyncpa [#allocation3], 1
    %1997 = vsyncpa [#allocation8], 1
    %1998 = vsyncpa [#allocation11], 1
    %1999 = vsyncpa [#allocation14], 1
    %2000 = vsyncpa [#allocation17], 1
    %2001 = vsyncpa [#allocation4], 1
    %2002 = vsyncpa [#allocation5], 1

</llo_original>
